<compile_context>
chip_gen: v7x
topology: tpu7x:2x2x1
jax: 0.10.0
libtpu: 0.0.40
codegen_flags: <defaults>
</compile_context>

<pallas_src>
import functools

import jax
import jax.numpy as jnp
from jax.experimental import pallas as pl
from jax.experimental.pallas import tpu as pltpu


def influence_kernel(x_ref, ibias_ref, u_ref, len_ref,
                     wf_ref, bf_ref, wc1f_ref, wc2_ref, bc2_ref,
                     comb_ref, attn_ref, *, mm_dtype):
    TB, N = attn_ref.shape                    # batch tile, padded neighbor count
    E = comb_ref.shape[1]
    R = x_ref.shape[0]                        # TB * N rows fed to the MXU

    # --- fusion: ReLU([emb ; profile] @ Wf + bf)  (one fused K=2E bf16 matmul)
    fused = jnp.dot(x_ref[...], wf_ref[...],
                    preferred_element_type=jnp.float32)            # [R, E] f32
    fused = jnp.maximum(fused + bf_ref[...], 0.0)

    # --- coupling 1: ReLU(fused @ Wc1_fused + (i_emb @ Wc1_item + bc1)) -------
    # (item term precomputed in the wrapper as ibias; broadcast once to rows)
    ib_rows = jnp.broadcast_to(ibias_ref[...][:, None, :],
                               (TB, N, E)).reshape(R, E)           # [R, E]
    c1 = jnp.dot(fused.astype(mm_dtype), wc1f_ref[...],
                 preferred_element_type=jnp.float32)               # [R, E] f32
    c1 = jnp.maximum(c1 + ib_rows, 0.0)

    # --- coupling 2: ReLU(c1 @ Wc2 + bc2) -------------------------------------
    c2 = jnp.dot(c1.astype(mm_dtype), wc2_ref[...],
                 preferred_element_type=jnp.float32)               # [R, E] f32
    c2 = jnp.maximum(c2 + bc2_ref[...], 0.0)

    # --- att: masked softmax over the N active users of <c2, u_emb>  (f32) ----
    c2_3 = c2.reshape(TB, N, E)                                    # single 3-D view
    scores = jnp.sum(c2_3 * u_ref[...][:, None, :], axis=-1)       # [TB, N]
    col = jax.lax.broadcasted_iota(jnp.int32, (TB, N), 1)
    scores = jnp.where(col < len_ref[...], scores, -1e30)          # pad mask
    m = jnp.max(scores, axis=1, keepdims=True)
    e = jnp.exp(scores - m)
    attn = e * pl.reciprocal(jnp.sum(e, axis=1, keepdims=True),
                             approx=True)                          # [TB, N]

    # --- neigh_feature = sum_n attn * coupling_fea ----------------------------
    comb_ref[...] = jnp.sum(c2_3 * attn[:, :, None], axis=1)       # [TB, E]
    attn_ref[...] = attn                                           # [TB, N]


def influence_prop(act_users, lengths, u_embs, i_embs, user_embs, user_profiles,
                   params, *, block_b=None, mm_in_bf16=True):
    """InfluenceProp forward.

    act_users: [B, N] int32 padded neighbor ids, lengths: [B] valid counts.
    Returns (combined_feature [B, E] f32, attention [B, N] f32, zero on pads).
    Set mm_in_bf16=False on v5e to skip the intermediate bf16 packing passes.
    """
    wf, bf, wc1, bc1, wc2, bc2 = params
    B, N = act_users.shape
    E = int(u_embs.shape[-1])

    # Batch tile: target ~1024 MXU rows per grid step (small steps are
    # overhead-dominated at E=32), bounded so 3x f32 [R,E] temporaries stay
    # ~<=384 KiB, capped at ceil(B/2) so the grid keeps >=2 steps (v7x
    # megacore).  Per-step VMEM (double-buffered bf16 x tile + aux/out tiles +
    # f32 temps) stays well under 16 MiB on every generation at these sizes.
    if block_b is None:
        target_rows = max(256, min(2048, (384 * 1024) // (12 * max(E, 1))))
        block_b = -(-target_rows // N)
    block_b = min(block_b, max(8, -(-B // 2)))
    TB = max(8, ((block_b + 7) // 8) * 8)
    Bp = -(-B // TB) * TB
    pad = Bp - B
    if pad:
        act_users = jnp.concatenate(
            [act_users, jnp.zeros((pad, N), act_users.dtype)], axis=0)
        lengths = jnp.concatenate(
            [lengths, jnp.ones((pad,), lengths.dtype)], axis=0)
        u_embs = jnp.concatenate(
            [u_embs, jnp.zeros((pad, E), u_embs.dtype)], axis=0)
        i_embs = jnp.concatenate(
            [i_embs, jnp.zeros((pad, E), i_embs.dtype)], axis=0)

    # Gathered neighbor features, [emb ; profile] concatenated along lanes,
    # streamed to the kernel in bf16 (halves the dominant HBM traffic).
    # TODO(synk): eliminate this materialized gather with scalar-prefetched
    # act_users + an in-kernel DMA gather of user_embs / user_profiles rows.
    xflat = jnp.concatenate(
        [user_embs.astype(jnp.bfloat16)[act_users],
         user_profiles.astype(jnp.bfloat16)[act_users]],
        axis=-1).reshape(Bp * N, 2 * E)

    mm_dtype = jnp.bfloat16 if mm_in_bf16 else jnp.float32
    wf_b = wf.astype(jnp.bfloat16)                     # [2E, E]  fused Wf
    wc1_f = wc1[:E].astype(mm_dtype)                   # [E, E]   fused-feature half
    wc1_i = wc1[E:].astype(jnp.float32)                # [E, E]   item half (hoisted)
    wc2_b = wc2.astype(mm_dtype)                       # [E, E]
    bf2 = bf.astype(jnp.float32).reshape(1, E)
    bc2_2 = bc2.astype(jnp.float32).reshape(1, E)

    # Hoist the per-item term of w_c1 out of the kernel: i_bias = i@Wc1_i + bc1.
    ibias = (i_embs.astype(jnp.float32) @ wc1_i
             + bc1.astype(jnp.float32))                # [Bp, E]
    u2 = u_embs.astype(jnp.float32)                    # [Bp, E]
    lens2 = lengths.astype(jnp.int32).reshape(Bp, 1)   # [Bp, 1] (in-kernel mask)

    const = lambda r, c: pl.BlockSpec((r, c), lambda b: (0, 0))
    comb, attn = pl.pallas_call(
        functools.partial(influence_kernel, mm_dtype=mm_dtype),
        grid=(Bp // TB,),
        in_specs=[
            pl.BlockSpec((TB * N, 2 * E), lambda b: (b, 0)),   # gathered [emb;prof]
            pl.BlockSpec((TB, E), lambda b: (b, 0)),           # i_bias
            pl.BlockSpec((TB, E), lambda b: (b, 0)),           # u_emb
            pl.BlockSpec((TB, 1), lambda b: (b, 0)),           # valid lengths
            const(2 * E, E),                                   # Wf (fused)
            const(1, E),                                       # bf
            const(E, E),                                       # Wc1 (fused half)
            const(E, E),                                       # Wc2
            const(1, E),                                       # bc2
        ],
        out_specs=[
            pl.BlockSpec((TB, E), lambda b: (b, 0)),
            pl.BlockSpec((TB, N), lambda b: (b, 0)),
        ],
        out_shape=[
            jax.ShapeDtypeStruct((Bp, E), jnp.float32),
            jax.ShapeDtypeStruct((Bp, N), jnp.float32),
        ],
        compiler_params=pltpu.CompilerParams(
            dimension_semantics=("parallel",)),
    )(xflat, ibias, u2, lens2, wf_b, bf2, wc1_f, wc2_b, bc2_2)

    return comb[:B], attn[:B]


def influence_prop_ref(act_users, lengths, u_embs, i_embs, user_embs,
                       user_profiles, params):
    """Pure-JAX mirror of the (ragged) PyTorch forward.

    Matmul inputs are rounded to bf16 (matching the kernel's native MXU input
    precision); accumulation, softmax and the attention-weighted sum are f32.
    """
    wf, bf, wc1, bc1, wc2, bc2 = [p.astype(jnp.float32) for p in params]
    f32 = lambda a: a.astype(jnp.float32)
    rnd = lambda a: a.astype(jnp.bfloat16).astype(jnp.float32)   # MXU input rounding
    B, N = act_users.shape
    combs, attns = [], []
    for b in range(B):
        n = int(lengths[b])
        idx = act_users[b, :n]
        e, p = f32(user_embs[idx]), f32(user_profiles[idx])
        fused = jax.nn.relu(jnp.concatenate([e, p], axis=1) @ wf + bf)
        cf = jnp.concatenate(
            [fused, jnp.tile(f32(i_embs[b])[None, :], (n, 1))], axis=1)
        cf = jax.nn.relu(rnd(cf) @ wc1 + bc1)
        cf = jax.nn.relu(rnd(cf) @ wc2 + bc2)
        scores = jnp.sum(cf * f32(u_embs[b])[None, :], axis=-1)
        attn = jax.nn.softmax(scores)                              # [n]
        combs.append(jnp.sum(cf * attn[:, None], axis=0))          # [E]
        attns.append(jnp.pad(attn, (0, N - n)))                    # [N]
    return jnp.stack(combs), jnp.stack(attns)


if __name__ == "__main__":
    key = jax.random.PRNGKey(0)
    B, N, E, num_users = 64, 8, 32, 200
    ks = jax.random.split(key, 12)
    bf16 = jnp.bfloat16

    # Model tensors stored in bf16 (native MXU input dtype).
    user_embs = jax.random.normal(ks[0], (num_users, E), jnp.float32).astype(bf16)
    user_profiles = jax.random.normal(ks[1], (num_users, E), jnp.float32).astype(bf16)
    u_embs = jax.random.normal(ks[2], (B, E), jnp.float32).astype(bf16)
    i_embs = jax.random.normal(ks[3], (B, E), jnp.float32).astype(bf16)
    act_users = jax.random.randint(ks[4], (B, N), 0, num_users)
    lengths = jax.random.randint(ks[5], (B,), 1, N + 1)    # ragged neighbor counts

    wf = (0.1 * jax.random.normal(ks[6], (2 * E, E), jnp.float32)).astype(bf16)
    bfb = (0.1 * jax.random.normal(ks[7], (E,), jnp.float32)).astype(bf16)
    wc1 = (0.1 * jax.random.normal(ks[8], (2 * E, E), jnp.float32)).astype(bf16)
    bc1 = (0.1 * jax.random.normal(ks[9], (E,), jnp.float32)).astype(bf16)
    wc2 = (0.1 * jax.random.normal(ks[10], (E, E), jnp.float32)).astype(bf16)
    bc2 = (0.1 * jax.random.normal(ks[11], (E,), jnp.float32)).astype(bf16)
    params = (wf, bfb, wc1, bc1, wc2, bc2)

    comb, attn = influence_prop(act_users, lengths, u_embs, i_embs,
                                user_embs, user_profiles, params)
    jax.block_until_ready((comb, attn))

    comb_ref, attn_ref = influence_prop_ref(act_users, lengths, u_embs, i_embs,
                                            user_embs, user_profiles, params)
    assert comb.shape == (B, E) and attn.shape == (B, N)
    # bf16 matmul operands (f32 accumulation) + approx-reciprocal softmax
    # (~2^-12 relative) -> expected agreement ~1e-3; 1e-2 leaves margin.
    assert jnp.allclose(comb, comb_ref, atol=1e-2, rtol=1e-2), \
        float(jnp.max(jnp.abs(comb - comb_ref)))
    assert jnp.allclose(attn, attn_ref, atol=1e-2, rtol=1e-2), \
        float(jnp.max(jnp.abs(attn - attn_ref)))

    print("KERNEL_OK")
</pallas_src>

<mosaic_0001>
module attributes {stable_mosaic.version = 11 : i64} {
  func.func @influence_kernel(%arg0: i32, %arg1: memref<256x64xbf16, #tpu.memory_space<vmem>>, %arg2: memref<32x32xf32, #tpu.memory_space<vmem>>, %arg3: memref<32x32xf32, #tpu.memory_space<vmem>>, %arg4: memref<32x1xi32, #tpu.memory_space<vmem>>, %arg5: memref<64x32xbf16, #tpu.memory_space<vmem>>, %arg6: memref<1x32xf32, #tpu.memory_space<vmem>>, %arg7: memref<32x32xbf16, #tpu.memory_space<vmem>>, %arg8: memref<32x32xbf16, #tpu.memory_space<vmem>>, %arg9: memref<1x32xf32, #tpu.memory_space<vmem>>, %arg10: memref<32x32xf32, #tpu.memory_space<vmem>>, %arg11: memref<32x8xf32, #tpu.memory_space<vmem>>) attributes {dimension_semantics = [#tpu.dimension_semantics<parallel>], iteration_bounds = array<i64: 2>, scalar_prefetch = 0 : i64, scratch_operands = 0 : i64, tpu.core_type = #tpu.core_type<tc>, window_params = [{transform_indices = @transform_0, window_bounds = array<i64: 256, 64>}, {transform_indices = @transform_1, window_bounds = array<i64: 32, 32>}, {transform_indices = @transform_2, window_bounds = array<i64: 32, 32>}, {transform_indices = @transform_3, window_bounds = array<i64: 32, 1>}, {pipeline_mode = #tpu.pipeline_mode<synchronous>, transform_indices = @transform_4, window_bounds = array<i64: 64, 32>}, {pipeline_mode = #tpu.pipeline_mode<synchronous>, transform_indices = @transform_5, window_bounds = array<i64: 1, 32>}, {pipeline_mode = #tpu.pipeline_mode<synchronous>, transform_indices = @transform_6, window_bounds = array<i64: 32, 32>}, {pipeline_mode = #tpu.pipeline_mode<synchronous>, transform_indices = @transform_7, window_bounds = array<i64: 32, 32>}, {pipeline_mode = #tpu.pipeline_mode<synchronous>, transform_indices = @transform_8, window_bounds = array<i64: 1, 32>}, {transform_indices = @transform_9, window_bounds = array<i64: 32, 32>}, {transform_indices = @transform_10, window_bounds = array<i64: 32, 8>}]} {
    %c0 = arith.constant 0 : index
    %c0_0 = arith.constant 0 : index
    %0 = vector.load %arg1[%c0, %c0_0] : memref<256x64xbf16, #tpu.memory_space<vmem>>, vector<256x64xbf16>
    %c0_1 = arith.constant 0 : index
    %c0_2 = arith.constant 0 : index
    %1 = vector.load %arg5[%c0_1, %c0_2] : memref<64x32xbf16, #tpu.memory_space<vmem>>, vector<64x32xbf16>
    %cst = arith.constant dense<0.000000e+00> : vector<256x32xf32>
    %2 = tpu.matmul %0, %1, %cst {dimension_numbers = #tpu.dot_dimension_numbers<[1], [0], [0], [1], [0, 0, 1, 1], [], []>} : vector<256x64xbf16>, vector<64x32xbf16>, vector<256x32xf32> -> vector<256x32xf32>
    %c0_3 = arith.constant 0 : index
    %c0_4 = arith.constant 0 : index
    %3 = vector.load %arg6[%c0_3, %c0_4] : memref<1x32xf32, #tpu.memory_space<vmem>>, vector<1x32xf32>
    %4 = vector.broadcast %3 : vector<1x32xf32> to vector<256x32xf32>
    %5 = arith.addf %2, %4 : vector<256x32xf32>
    %cst_5 = arith.constant 0.000000e+00 : f32
    %6 = vector.broadcast %cst_5 : f32 to vector<256x32xf32>
    %7 = arith.maximumf %5, %6 : vector<256x32xf32>
    %c0_6 = arith.constant 0 : index
    %c0_7 = arith.constant 0 : index
    %8 = vector.load %arg2[%c0_6, %c0_7] : memref<32x32xf32, #tpu.memory_space<vmem>>, vector<32x32xf32>
    %9 = vector.shape_cast %8 : vector<32x32xf32> to vector<32x1x32xf32>
    %10 = vector.shape_cast %9 : vector<32x1x32xf32> to vector<32x1x32xf32>
    %11 = vector.broadcast %10 : vector<32x1x32xf32> to vector<32x8x32xf32>
    %12 = vector.shape_cast %11 : vector<32x8x32xf32> to vector<256x32xf32>
    %13 = arith.truncf %7 : vector<256x32xf32> to vector<256x32xbf16>
    %c0_8 = arith.constant 0 : index
    %c0_9 = arith.constant 0 : index
    %14 = vector.load %arg7[%c0_8, %c0_9] : memref<32x32xbf16, #tpu.memory_space<vmem>>, vector<32x32xbf16>
    %cst_10 = arith.constant dense<0.000000e+00> : vector<256x32xf32>
    %15 = tpu.matmul %13, %14, %cst_10 {dimension_numbers = #tpu.dot_dimension_numbers<[1], [0], [0], [1], [0, 0, 1, 1], [], []>} : vector<256x32xbf16>, vector<32x32xbf16>, vector<256x32xf32> -> vector<256x32xf32>
    %16 = arith.addf %15, %12 : vector<256x32xf32>
    %cst_11 = arith.constant 0.000000e+00 : f32
    %17 = vector.broadcast %cst_11 : f32 to vector<256x32xf32>
    %18 = arith.maximumf %16, %17 : vector<256x32xf32>
    %19 = arith.truncf %18 : vector<256x32xf32> to vector<256x32xbf16>
    %c0_12 = arith.constant 0 : index
    %c0_13 = arith.constant 0 : index
    %20 = vector.load %arg8[%c0_12, %c0_13] : memref<32x32xbf16, #tpu.memory_space<vmem>>, vector<32x32xbf16>
    %cst_14 = arith.constant dense<0.000000e+00> : vector<256x32xf32>
    %21 = tpu.matmul %19, %20, %cst_14 {dimension_numbers = #tpu.dot_dimension_numbers<[1], [0], [0], [1], [0, 0, 1, 1], [], []>} : vector<256x32xbf16>, vector<32x32xbf16>, vector<256x32xf32> -> vector<256x32xf32>
    %c0_15 = arith.constant 0 : index
    %c0_16 = arith.constant 0 : index
    %22 = vector.load %arg9[%c0_15, %c0_16] : memref<1x32xf32, #tpu.memory_space<vmem>>, vector<1x32xf32>
    %23 = vector.broadcast %22 : vector<1x32xf32> to vector<256x32xf32>
    %24 = arith.addf %21, %23 : vector<256x32xf32>
    %cst_17 = arith.constant 0.000000e+00 : f32
    %25 = vector.broadcast %cst_17 : f32 to vector<256x32xf32>
    %26 = arith.maximumf %24, %25 : vector<256x32xf32>
    %27 = vector.shape_cast %26 : vector<256x32xf32> to vector<32x8x32xf32>
    %c0_18 = arith.constant 0 : index
    %c0_19 = arith.constant 0 : index
    %28 = vector.load %arg3[%c0_18, %c0_19] : memref<32x32xf32, #tpu.memory_space<vmem>>, vector<32x32xf32>
    %29 = vector.shape_cast %28 : vector<32x32xf32> to vector<32x1x32xf32>
    %30 = vector.broadcast %29 : vector<32x1x32xf32> to vector<32x8x32xf32>
    %31 = arith.mulf %27, %30 : vector<32x8x32xf32>
    %cst_20 = arith.constant dense<0.000000e+00> : vector<32x8xf32>
    %32 = vector.multi_reduction <add>, %31, %cst_20 [2] : vector<32x8x32xf32> to vector<32x8xf32>
    %33 = tpu.iota {dimensions = array<i32: 1>} : vector<32x8xi32>
    %c0_21 = arith.constant 0 : index
    %c0_22 = arith.constant 0 : index
    %34 = vector.load %arg4[%c0_21, %c0_22] : memref<32x1xi32, #tpu.memory_space<vmem>>, vector<32x1xi32>
    %35 = vector.broadcast %34 : vector<32x1xi32> to vector<32x8xi32>
    %36 = arith.cmpi slt, %33, %35 : vector<32x8xi32>
    %cst_23 = arith.constant -1.000000e+30 : f32
    %37 = vector.broadcast %cst_23 : f32 to vector<32x8xf32>
    %38 = arith.select %36, %32, %37 : vector<32x8xi1>, vector<32x8xf32>
    %cst_24 = arith.constant dense<0xFF800000> : vector<32xf32>
    %39 = vector.multi_reduction <maximumf>, %38, %cst_24 [1] : vector<32x8xf32> to vector<32xf32>
    %40 = vector.shape_cast %39 : vector<32xf32> to vector<32x1xf32>
    %41 = vector.broadcast %40 : vector<32x1xf32> to vector<32x8xf32>
    %42 = arith.subf %38, %41 : vector<32x8xf32>
    %43 = math.exp %42 : vector<32x8xf32>
    %cst_25 = arith.constant dense<0.000000e+00> : vector<32xf32>
    %44 = vector.multi_reduction <add>, %43, %cst_25 [1] : vector<32x8xf32> to vector<32xf32>
    %45 = vector.shape_cast %44 : vector<32xf32> to vector<32x1xf32>
    %46 = tpu.reciprocal %45 {approx = true} : vector<32x1xf32> -> vector<32x1xf32>
    %47 = vector.broadcast %46 : vector<32x1xf32> to vector<32x8xf32>
    %48 = arith.mulf %43, %47 : vector<32x8xf32>
    %49 = vector.shape_cast %48 : vector<32x8xf32> to vector<32x8x1xf32>
    %50 = vector.broadcast %49 : vector<32x8x1xf32> to vector<32x8x32xf32>
    %51 = arith.mulf %27, %50 : vector<32x8x32xf32>
    %cst_26 = arith.constant dense<0.000000e+00> : vector<32x32xf32>
    %52 = vector.multi_reduction <add>, %51, %cst_26 [1] : vector<32x8x32xf32> to vector<32x32xf32>
    %c0_27 = arith.constant 0 : index
    %c0_28 = arith.constant 0 : index
    %53 = vector.load %arg10[%c0_27, %c0_28] : memref<32x32xf32, #tpu.memory_space<vmem>>, vector<32x32xf32>
    tpu.vector_store %arg10[%c0_27, %c0_28], %52 {strides = array<i32>} : memref<32x32xf32, #tpu.memory_space<vmem>>, vector<32x32xf32>,
    %c0_29 = arith.constant 0 : index
    %c0_30 = arith.constant 0 : index
    %54 = vector.load %arg11[%c0_29, %c0_30] : memref<32x8xf32, #tpu.memory_space<vmem>>, vector<32x8xf32>
    tpu.vector_store %arg11[%c0_29, %c0_30], %48 {strides = array<i32>} : memref<32x8xf32, #tpu.memory_space<vmem>>, vector<32x8xf32>,
    return
  }
  func.func @transform_0(%arg0: i32) -> (i32, i32) {
    %c0_i32 = arith.constant 0 : i32
    %c0_i32_0 = arith.constant 0 : i32
    return %arg0, %c0_i32 : i32, i32
  }
  func.func @transform_1(%arg0: i32) -> (i32, i32) {
    %c0_i32 = arith.constant 0 : i32
    %c0_i32_0 = arith.constant 0 : i32
    return %arg0, %c0_i32 : i32, i32
  }
  func.func @transform_2(%arg0: i32) -> (i32, i32) {
    %c0_i32 = arith.constant 0 : i32
    %c0_i32_0 = arith.constant 0 : i32
    return %arg0, %c0_i32 : i32, i32
  }
  func.func @transform_3(%arg0: i32) -> (i32, i32) {
    %c0_i32 = arith.constant 0 : i32
    %c0_i32_0 = arith.constant 0 : i32
    return %arg0, %c0_i32 : i32, i32
  }
  func.func @transform_4(%arg0: i32) -> (i32, i32) {
    %c0_i32 = arith.constant 0 : i32
    %c0_i32_0 = arith.constant 0 : i32
    %c0_i32_1 = arith.constant 0 : i32
    return %c0_i32, %c0_i32_0 : i32, i32
  }
  func.func @transform_5(%arg0: i32) -> (i32, i32) {
    %c0_i32 = arith.constant 0 : i32
    %c0_i32_0 = arith.constant 0 : i32
    %c0_i32_1 = arith.constant 0 : i32
    return %c0_i32, %c0_i32_0 : i32, i32
  }
  func.func @transform_6(%arg0: i32) -> (i32, i32) {
    %c0_i32 = arith.constant 0 : i32
    %c0_i32_0 = arith.constant 0 : i32
    %c0_i32_1 = arith.constant 0 : i32
    return %c0_i32, %c0_i32_0 : i32, i32
  }
  func.func @transform_7(%arg0: i32) -> (i32, i32) {
    %c0_i32 = arith.constant 0 : i32
    %c0_i32_0 = arith.constant 0 : i32
    %c0_i32_1 = arith.constant 0 : i32
    return %c0_i32, %c0_i32_0 : i32, i32
  }
  func.func @transform_8(%arg0: i32) -> (i32, i32) {
    %c0_i32 = arith.constant 0 : i32
    %c0_i32_0 = arith.constant 0 : i32
    %c0_i32_1 = arith.constant 0 : i32
    return %c0_i32, %c0_i32_0 : i32, i32
  }
  func.func @transform_9(%arg0: i32) -> (i32, i32) {
    %c0_i32 = arith.constant 0 : i32
    %c0_i32_0 = arith.constant 0 : i32
    return %arg0, %c0_i32 : i32, i32
  }
  func.func @transform_10(%arg0: i32) -> (i32, i32) {
    %c0_i32 = arith.constant 0 : i32
    %c0_i32_0 = arith.constant 0 : i32
    return %arg0, %c0_i32 : i32, i32
  }
}

</mosaic_0001>

<llo_original>
// kernel: tpu_custom_call.1
$region0: #{tpu_custom_call.1}
  #allocation0 [shape = 'u32[]', space=smem, size = 0x4, offset = 0x4, fixed_abs, tag = 'smem constant byte address 0x4 - core index']
  #allocation1 [shape = 'u32[144,128]{1,0:T(1,128)}', space=vmem, size = 0x12000, scoped, tag = 'internal scratch']
  %s0 = inlined_call_operand.vmem [shape: bf16[512,64], index: 0, kind: input, shape index: {}]
  %s1 = inlined_call_operand.vmem [shape: f32[64,32], index: 1, kind: input, shape index: {}]
  %s2 = inlined_call_operand.vmem [shape: f32[64,32], index: 2, kind: input, shape index: {}]
  %s3 = inlined_call_operand.vmem [shape: s32[64,1], index: 3, kind: input, shape index: {}]
  %s4 = inlined_call_operand.vmem [shape: bf16[64,32], index: 4, kind: input, shape index: {}]
  %s5 = inlined_call_operand.vmem [shape: f32[1,32], index: 5, kind: input, shape index: {}]
  %s6 = inlined_call_operand.vmem [shape: bf16[32,32], index: 6, kind: input, shape index: {}]
  %s7 = inlined_call_operand.vmem [shape: bf16[32,32], index: 7, kind: input, shape index: {}]
  %s8 = inlined_call_operand.vmem [shape: f32[1,32], index: 8, kind: input, shape index: {}]
  %s9 = inlined_call_operand.vmem [shape: f32[64,32], index: 9, kind: output, shape index: {0}]
  %s10 = inlined_call_operand.vmem [shape: f32[64,8], index: 10, kind: output, shape index: {1}]
  %11 = xla_tuple %s9, %s10
  %s12 = sld [smem:[#allocation0]]
  $region77: #{tpu_custom_call.1} parent=0
    _
  %s14 = ssub.s32 1, %s12
  %s15 = scalar_select 0, %s14, %s12
  loop: start=0, step=1, limit=4
  $region2: #{tpu_custom_call.1} parent=0 // loop_pre_header
    _
  $region3: #{tpu_custom_call.1} parent=0 // loop_header
    %s17 = sphi 0, %s21
    %p18 = scmp.ge.s32.totalorder %s17, 4
    %s27 = sphi 0, %s29
    %s30 = sphi 0, %s27
    %s31 = sphi 0, %s30
    %s47 = sphi 0, %s31
    %s53 = sphi 0, %s55
    %s56 = sphi 0, %s53
    %s57 = sphi 0, %s56
    %s73 = sphi 0, %s57
    %s79 = sphi 0, %s81
    %s82 = sphi 0, %s79
    %s83 = sphi 0, %s82
    %s99 = sphi 0, %s83
    %s105 = sphi 0, %s107
    %s108 = sphi 0, %s105
    %s109 = sphi 0, %s108
    %s125 = sphi 0, %s109
    %s129 = sphi 0, %s129
    %s131 = sphi 0, %s129
    %s132 = sphi 0, %s131
    %s146 = sphi 0, %s132
    %s150 = sphi 0, %s150
    %s152 = sphi 0, %s150
    %s153 = sphi 0, %s152
    %s167 = sphi 0, %s153
    %s171 = sphi 0, %s171
    %s173 = sphi 0, %s171
    %s174 = sphi 0, %s173
    %s188 = sphi 0, %s174
    %s192 = sphi 0, %s192
    %s194 = sphi 0, %s192
    %s195 = sphi 0, %s194
    %s209 = sphi 0, %s195
    %s213 = sphi 0, %s213
    %s215 = sphi 0, %s213
    %s216 = sphi 0, %s215
    %s230 = sphi 0, %s216
    %s236 = sphi 0, %s238
    %s239 = sphi 0, %s236
    %s240 = sphi 0, %s239
    %s256 = sphi 0, %s240
    %s262 = sphi 0, %s264
    %s265 = sphi 0, %s262
    %s266 = sphi 0, %s265
    %s282 = sphi 0, %s266
  $region4: #{tpu_custom_call.1} parent=0 // loop_header_branch
    %20 = sbr.rel (%p18) target = $region8
  $region5: #{tpu_custom_call.1} parent=0 // loop_body
    %s22 = ssub.s32 %s17, 1
    %s23 = ssub.s32 %s17, 2
    %s24 = sadd.s32 %s17, 1
    %s25 = ssub.s32 %s17, %s24
    %p26 = scmp.eq.s32.totalorder %s25, 0
    %s28 = sadd.s32 %s27, 1
    %s29 = scalar_select %p26, %s27, %s28
    %p32 = pneg %p26
    %p33 = scmp.eq.s32.totalorder %s17, 1
    %p34 = por %p32, %p33
    %p35 = scmp.ne.s32.totalorder %s27, %s30
    %p36 = scmp.eq.s32.totalorder %s17, 0
    %p37 = por %p35, %p36
    %p38 = scmp.ne.s32.totalorder %s27, %s30
    %p39 = scmp.eq.s32.totalorder %s22, 1
    %p40 = por %p38, %p39
    %p41 = scmp.ne.s32.totalorder %s30, %s31
    %p42 = scmp.eq.s32.totalorder %s22, 0
    %p43 = por %p41, %p42
    %p44 = scmp.ne.s32.totalorder %s30, %s31
    %p45 = scmp.eq.s32.totalorder %s23, 1
    %p46 = por %p44, %p45
    %p48 = scmp.ne.s32.totalorder %s31, %s47
    %p49 = scmp.eq.s32.totalorder %s23, 0
    %p50 = por %p48, %p49
    %s51 = ssub.s32 %s17, %s24
    %p52 = scmp.eq.s32.totalorder %s51, 0
    %s54 = sadd.s32 %s53, 1
    %s55 = scalar_select %p52, %s53, %s54
    %p58 = pneg %p52
    %p59 = scmp.eq.s32.totalorder %s17, 1
    %p60 = por %p58, %p59
    %p61 = scmp.ne.s32.totalorder %s53, %s56
    %p62 = scmp.eq.s32.totalorder %s17, 0
    %p63 = por %p61, %p62
    %p64 = scmp.ne.s32.totalorder %s53, %s56
    %p65 = scmp.eq.s32.totalorder %s22, 1
    %p66 = por %p64, %p65
    %p67 = scmp.ne.s32.totalorder %s56, %s57
    %p68 = scmp.eq.s32.totalorder %s22, 0
    %p69 = por %p67, %p68
    %p70 = scmp.ne.s32.totalorder %s56, %s57
    %p71 = scmp.eq.s32.totalorder %s23, 1
    %p72 = por %p70, %p71
    %p74 = scmp.ne.s32.totalorder %s57, %s73
    %p75 = scmp.eq.s32.totalorder %s23, 0
    %p76 = por %p74, %p75
    %s77 = ssub.s32 %s17, %s24
    %p78 = scmp.eq.s32.totalorder %s77, 0
    %s80 = sadd.s32 %s79, 1
    %s81 = scalar_select %p78, %s79, %s80
    %p84 = pneg %p78
    %p85 = scmp.eq.s32.totalorder %s17, 1
    %p86 = por %p84, %p85
    %p87 = scmp.ne.s32.totalorder %s79, %s82
    %p88 = scmp.eq.s32.totalorder %s17, 0
    %p89 = por %p87, %p88
    %p90 = scmp.ne.s32.totalorder %s79, %s82
    %p91 = scmp.eq.s32.totalorder %s22, 1
    %p92 = por %p90, %p91
    %p93 = scmp.ne.s32.totalorder %s82, %s83
    %p94 = scmp.eq.s32.totalorder %s22, 0
    %p95 = por %p93, %p94
    %p96 = scmp.ne.s32.totalorder %s82, %s83
    %p97 = scmp.eq.s32.totalorder %s23, 1
    %p98 = por %p96, %p97
    %p100 = scmp.ne.s32.totalorder %s83, %s99
    %p101 = scmp.eq.s32.totalorder %s23, 0
    %p102 = por %p100, %p101
    %s103 = ssub.s32 %s17, %s24
    %p104 = scmp.eq.s32.totalorder %s103, 0
    %s106 = sadd.s32 %s105, 1
    %s107 = scalar_select %p104, %s105, %s106
    %p110 = pneg %p104
    %p111 = scmp.eq.s32.totalorder %s17, 1
    %p112 = por %p110, %p111
    %p113 = scmp.ne.s32.totalorder %s105, %s108
    %p114 = scmp.eq.s32.totalorder %s17, 0
    %p115 = por %p113, %p114
    %p116 = scmp.ne.s32.totalorder %s105, %s108
    %p117 = scmp.eq.s32.totalorder %s22, 1
    %p118 = por %p116, %p117
    %p119 = scmp.ne.s32.totalorder %s108, %s109
    %p120 = scmp.eq.s32.totalorder %s22, 0
    %p121 = por %p119, %p120
    %p122 = scmp.ne.s32.totalorder %s108, %s109
    %p123 = scmp.eq.s32.totalorder %s23, 1
    %p124 = por %p122, %p123
    %p126 = scmp.ne.s32.totalorder %s109, %s125
    %p127 = scmp.eq.s32.totalorder %s23, 0
    %p128 = por %p126, %p127
    %s130 = sadd.s32 %s129, 1
    %p133 = scmp.eq.s32.totalorder %s17, 1
    %p134 = scmp.ne.s32.totalorder %s129, %s131
    %p135 = scmp.eq.s32.totalorder %s17, 0
    %p136 = por %p134, %p135
    %p137 = scmp.ne.s32.totalorder %s129, %s131
    %p138 = scmp.eq.s32.totalorder %s22, 1
    %p139 = por %p137, %p138
    %p140 = scmp.ne.s32.totalorder %s131, %s132
    %p141 = scmp.eq.s32.totalorder %s22, 0
    %p142 = por %p140, %p141
    %p143 = scmp.ne.s32.totalorder %s131, %s132
    %p144 = scmp.eq.s32.totalorder %s23, 1
    %p145 = por %p143, %p144
    %p147 = scmp.ne.s32.totalorder %s132, %s146
    %p148 = scmp.eq.s32.totalorder %s23, 0
    %p149 = por %p147, %p148
    %s151 = sadd.s32 %s150, 1
    %p154 = scmp.eq.s32.totalorder %s17, 1
    %p155 = scmp.ne.s32.totalorder %s150, %s152
    %p156 = scmp.eq.s32.totalorder %s17, 0
    %p157 = por %p155, %p156
    %p158 = scmp.ne.s32.totalorder %s150, %s152
    %p159 = scmp.eq.s32.totalorder %s22, 1
    %p160 = por %p158, %p159
    %p161 = scmp.ne.s32.totalorder %s152, %s153
    %p162 = scmp.eq.s32.totalorder %s22, 0
    %p163 = por %p161, %p162
    %p164 = scmp.ne.s32.totalorder %s152, %s153
    %p165 = scmp.eq.s32.totalorder %s23, 1
    %p166 = por %p164, %p165
    %p168 = scmp.ne.s32.totalorder %s153, %s167
    %p169 = scmp.eq.s32.totalorder %s23, 0
    %p170 = por %p168, %p169
    %s172 = sadd.s32 %s171, 1
    %p175 = scmp.eq.s32.totalorder %s17, 1
    %p176 = scmp.ne.s32.totalorder %s171, %s173
    %p177 = scmp.eq.s32.totalorder %s17, 0
    %p178 = por %p176, %p177
    %p179 = scmp.ne.s32.totalorder %s171, %s173
    %p180 = scmp.eq.s32.totalorder %s22, 1
    %p181 = por %p179, %p180
    %p182 = scmp.ne.s32.totalorder %s173, %s174
    %p183 = scmp.eq.s32.totalorder %s22, 0
    %p184 = por %p182, %p183
    %p185 = scmp.ne.s32.totalorder %s173, %s174
    %p186 = scmp.eq.s32.totalorder %s23, 1
    %p187 = por %p185, %p186
    %p189 = scmp.ne.s32.totalorder %s174, %s188
    %p190 = scmp.eq.s32.totalorder %s23, 0
    %p191 = por %p189, %p190
    %s193 = sadd.s32 %s192, 1
    %p196 = scmp.eq.s32.totalorder %s17, 1
    %p197 = scmp.ne.s32.totalorder %s192, %s194
    %p198 = scmp.eq.s32.totalorder %s17, 0
    %p199 = por %p197, %p198
    %p200 = scmp.ne.s32.totalorder %s192, %s194
    %p201 = scmp.eq.s32.totalorder %s22, 1
    %p202 = por %p200, %p201
    %p203 = scmp.ne.s32.totalorder %s194, %s195
    %p204 = scmp.eq.s32.totalorder %s22, 0
    %p205 = por %p203, %p204
    %p206 = scmp.ne.s32.totalorder %s194, %s195
    %p207 = scmp.eq.s32.totalorder %s23, 1
    %p208 = por %p206, %p207
    %p210 = scmp.ne.s32.totalorder %s195, %s209
    %p211 = scmp.eq.s32.totalorder %s23, 0
    %p212 = por %p210, %p211
    %s214 = sadd.s32 %s213, 1
    %p217 = scmp.eq.s32.totalorder %s17, 1
    %p218 = scmp.ne.s32.totalorder %s213, %s215
    %p219 = scmp.eq.s32.totalorder %s17, 0
    %p220 = por %p218, %p219
    %p221 = scmp.ne.s32.totalorder %s213, %s215
    %p222 = scmp.eq.s32.totalorder %s22, 1
    %p223 = por %p221, %p222
    %p224 = scmp.ne.s32.totalorder %s215, %s216
    %p225 = scmp.eq.s32.totalorder %s22, 0
    %p226 = por %p224, %p225
    %p227 = scmp.ne.s32.totalorder %s215, %s216
    %p228 = scmp.eq.s32.totalorder %s23, 1
    %p229 = por %p227, %p228
    %p231 = scmp.ne.s32.totalorder %s216, %s230
    %p232 = scmp.eq.s32.totalorder %s23, 0
    %p233 = por %p231, %p232
    %s234 = ssub.s32 %s17, %s24
    %p235 = scmp.eq.s32.totalorder %s234, 0
    %s237 = sadd.s32 %s236, 1
    %s238 = scalar_select %p235, %s236, %s237
    %p241 = pneg %p235
    %p242 = scmp.eq.s32.totalorder %s17, 1
    %p243 = por %p241, %p242
    %p244 = scmp.ne.s32.totalorder %s236, %s239
    %p245 = scmp.eq.s32.totalorder %s17, 0
    %p246 = por %p244, %p245
    %p247 = scmp.ne.s32.totalorder %s236, %s239
    %p248 = scmp.eq.s32.totalorder %s22, 1
    %p249 = por %p247, %p248
    %p250 = scmp.ne.s32.totalorder %s239, %s240
    %p251 = scmp.eq.s32.totalorder %s22, 0
    %p252 = por %p250, %p251
    %p253 = scmp.ne.s32.totalorder %s239, %s240
    %p254 = scmp.eq.s32.totalorder %s23, 1
    %p255 = por %p253, %p254
    %p257 = scmp.ne.s32.totalorder %s240, %s256
    %p258 = scmp.eq.s32.totalorder %s23, 0
    %p259 = por %p257, %p258
    %s260 = ssub.s32 %s17, %s24
    %p261 = scmp.eq.s32.totalorder %s260, 0
    %s263 = sadd.s32 %s262, 1
    %s264 = scalar_select %p261, %s262, %s263
    %p267 = pneg %p261
    %p268 = scmp.eq.s32.totalorder %s17, 1
    %p269 = por %p267, %p268
    %p270 = scmp.ne.s32.totalorder %s262, %s265
    %p271 = scmp.eq.s32.totalorder %s17, 0
    %p272 = por %p270, %p271
    %p273 = scmp.ne.s32.totalorder %s262, %s265
    %p274 = scmp.eq.s32.totalorder %s22, 1
    %p275 = por %p273, %p274
    %p276 = scmp.ne.s32.totalorder %s265, %s266
    %p277 = scmp.eq.s32.totalorder %s22, 0
    %p278 = por %p276, %p277
    %p279 = scmp.ne.s32.totalorder %s265, %s266
    %p280 = scmp.eq.s32.totalorder %s23, 1
    %p281 = por %p279, %p280
    %p283 = scmp.ne.s32.totalorder %s266, %s282
    %p284 = scmp.eq.s32.totalorder %s23, 0
    %p285 = por %p283, %p284
    %p286 = scmp.le.s32.totalorder 1, %s17
    %p287 = scmp.lt.s32.totalorder %s17, 3
    %p288 = pnand %p286, %p287
    %p289 = pneg %p288
    // Predicated region
    $region9: #{tpu_custom_call.1} parent=5 // pred_check
      _
    $region10: #{tpu_custom_call.1} parent=5 // pred_check_branch
      %291 = sbr.rel (%p288) target = $region12
    $region11: #{tpu_custom_call.1} parent=5 // pred_region
      %s292 = ssub.s32 %s17, 1
      // Predicated region
      $region13: #{tpu_custom_call.1} parent=11 // pred_check
        %p293 = pneg %p142
      $region14: #{tpu_custom_call.1} parent=11 // pred_check_branch
        %295 = sbr.rel (%p293) target = $region16
      $region15: #{tpu_custom_call.1} parent=11 // pred_region
        _
      $region16: #{tpu_custom_call.1} parent=11 // pred_fallthru
        _
      // Predicated region
      $region17: #{tpu_custom_call.1} parent=11 // pred_check
        %p296 = pneg %p163
      $region18: #{tpu_custom_call.1} parent=11 // pred_check_branch
        %298 = sbr.rel (%p296) target = $region20
      $region19: #{tpu_custom_call.1} parent=11 // pred_region
        _
      $region20: #{tpu_custom_call.1} parent=11 // pred_fallthru
        _
      // Predicated region
      $region21: #{tpu_custom_call.1} parent=11 // pred_check
        %p299 = pneg %p184
      $region22: #{tpu_custom_call.1} parent=11 // pred_check_branch
        %301 = sbr.rel (%p299) target = $region24
      $region23: #{tpu_custom_call.1} parent=11 // pred_region
        _
      $region24: #{tpu_custom_call.1} parent=11 // pred_fallthru
        _
      // Predicated region
      $region25: #{tpu_custom_call.1} parent=11 // pred_check
        %p302 = pneg %p205
      $region26: #{tpu_custom_call.1} parent=11 // pred_check_branch
        %304 = sbr.rel (%p302) target = $region28
      $region27: #{tpu_custom_call.1} parent=11 // pred_region
        _
      $region28: #{tpu_custom_call.1} parent=11 // pred_fallthru
        _
      // Predicated region
      $region29: #{tpu_custom_call.1} parent=11 // pred_check
        %p305 = pneg %p226
      $region30: #{tpu_custom_call.1} parent=11 // pred_check_branch
        %307 = sbr.rel (%p305) target = $region32
      $region31: #{tpu_custom_call.1} parent=11 // pred_region
        _
      $region32: #{tpu_custom_call.1} parent=11 // pred_fallthru
        _
    $region12: #{tpu_custom_call.1} parent=5 // pred_fallthru
      _
    %p308 = scmp.lt.s32.totalorder %s17, 2
    // Predicated region
    $region33: #{tpu_custom_call.1} parent=5 // pred_check
      %p309 = pneg %p308
    $region34: #{tpu_custom_call.1} parent=5 // pred_check_branch
      %311 = sbr.rel (%p309) target = $region36
    $region35: #{tpu_custom_call.1} parent=5 // pred_region
      // Predicated region
      $region37: #{tpu_custom_call.1} parent=35 // pred_check
        %p312 = pneg %p37
      $region38: #{tpu_custom_call.1} parent=35 // pred_check_branch
        %314 = sbr.rel (%p312) target = $region40
      $region39: #{tpu_custom_call.1} parent=35 // pred_region
        %s315 = smul.u32 32, %s17
        %p316 = scmp.lt.s32.totalorder %s315, 63
        %s317 = scalar_select %p316, %s315, 63
        %s318 = smul.addr %s317, 4
        %s319 = scalar_lea.vmem %s0, %s318
        %s320 = smul.u32 32, %s17
      $region40: #{tpu_custom_call.1} parent=35 // pred_fallthru
        _
      // Predicated region
      $region41: #{tpu_custom_call.1} parent=35 // pred_check
        %p321 = pneg %p63
      $region42: #{tpu_custom_call.1} parent=35 // pred_check_branch
        %323 = sbr.rel (%p321) target = $region44
      $region43: #{tpu_custom_call.1} parent=35 // pred_region
        %s324 = smul.u32 4, %s17
        %p325 = scmp.lt.s32.totalorder %s324, 7
        %s326 = scalar_select %p325, %s324, 7
        %s327 = smul.addr %s326, 8
        %s328 = scalar_lea.vmem %s1, %s327
        %s329 = smul.u32 4, %s17
      $region44: #{tpu_custom_call.1} parent=35 // pred_fallthru
        _
      // Predicated region
      $region45: #{tpu_custom_call.1} parent=35 // pred_check
        %p330 = pneg %p89
      $region46: #{tpu_custom_call.1} parent=35 // pred_check_branch
        %332 = sbr.rel (%p330) target = $region48
      $region47: #{tpu_custom_call.1} parent=35 // pred_region
        %s333 = smul.u32 4, %s17
        %p334 = scmp.lt.s32.totalorder %s333, 7
        %s335 = scalar_select %p334, %s333, 7
        %s336 = smul.addr %s335, 8
        %s337 = scalar_lea.vmem %s2, %s336
        %s338 = smul.u32 4, %s17
      $region48: #{tpu_custom_call.1} parent=35 // pred_fallthru
        _
      // Predicated region
      $region49: #{tpu_custom_call.1} parent=35 // pred_check
        %p339 = pneg %p115
      $region50: #{tpu_custom_call.1} parent=35 // pred_check_branch
        %341 = sbr.rel (%p339) target = $region52
      $region51: #{tpu_custom_call.1} parent=35 // pred_region
        %s342 = smul.u32 4, %s17
        %p343 = scmp.lt.s32.totalorder %s342, 7
        %s344 = scalar_select %p343, %s342, 7
        %s345 = smul.addr %s344, 8
        %s346 = scalar_lea.vmem %s3, %s345
        %s347 = smul.u32 4, %s17
      $region52: #{tpu_custom_call.1} parent=35 // pred_fallthru
        _
    $region36: #{tpu_custom_call.1} parent=5 // pred_fallthru
      _
    %p348 = scmp.le.s32.totalorder 1, %s17
    %p349 = scmp.lt.s32.totalorder %s17, 3
    %p350 = pnand %p348, %p349
    %p351 = pneg %p350
    // Predicated region
    $region53: #{tpu_custom_call.1} parent=5 // pred_check
      _
    $region54: #{tpu_custom_call.1} parent=5 // pred_check_branch
      %353 = sbr.rel (%p350) target = $region56
    $region55: #{tpu_custom_call.1} parent=5 // pred_region
      %s354 = ssub.s32 %s17, 1
      %s355 = smul.u32 32, %s22
      %p356 = scmp.lt.s32.totalorder %s355, 63
      %s357 = scalar_select %p356, %s355, 63
      %s358 = smul.addr %s357, 4
      %s359 = scalar_lea.vmem %s0, %s358
      %p360 = pneg %p43
      %p361 = pneg %p40
      %s362 = smul.u32 4, %s22
      %p363 = scmp.lt.s32.totalorder %s362, 7
      %s364 = scalar_select %p363, %s362, 7
      %s365 = smul.addr %s364, 8
      %s366 = scalar_lea.vmem %s1, %s365
      %p367 = pneg %p69
      %p368 = pneg %p66
      %s369 = smul.u32 4, %s22
      %p370 = scmp.lt.s32.totalorder %s369, 7
      %s371 = scalar_select %p370, %s369, 7
      %s372 = smul.addr %s371, 8
      %s373 = scalar_lea.vmem %s2, %s372
      %p374 = pneg %p95
      %p375 = pneg %p92
      %s376 = smul.u32 4, %s22
      %p377 = scmp.lt.s32.totalorder %s376, 7
      %s378 = scalar_select %p377, %s376, 7
      %s379 = smul.addr %s378, 8
      %s380 = scalar_lea.vmem %s3, %s379
      %p381 = pneg %p121
      %p382 = pneg %p118
      %p383 = pneg %p142
      %p384 = pneg %p139
      %p385 = pneg %p163
      %p386 = pneg %p160
      %p387 = pneg %p184
      %p388 = pneg %p181
      %p389 = pneg %p205
      %p390 = pneg %p202
      %p391 = pneg %p226
      %p392 = pneg %p223
      %p393 = pneg %p252
      %p394 = pneg %p249
      %s395 = smul.u32 4, %s22
      %p396 = scmp.lt.s32.totalorder %s395, 7
      %s397 = scalar_select %p396, %s395, 7
      %s398 = smul.addr %s397, 8
      %s399 = scalar_lea.vmem %s9, %s398
      %p400 = pneg %p278
      %p401 = pneg %p275
      %s402 = smul.u32 4, %s22
      %p403 = scmp.lt.s32.totalorder %s402, 7
      %s404 = scalar_select %p403, %s402, 7
      %s405 = smul.addr %s404, 8
      %s406 = scalar_lea.vmem %s10, %s405
      %s407 = smul.u32 32, %s22
      %p408 = scmp.lt.s32.totalorder %s407, 63
      %s409 = scalar_select %p408, %s407, 63
      %s410 = smul.addr %s409, 4
      %s411 = scalar_lea.vmem %s0, %s410
      %s412 = smul.u32 32, %s22
      %s413 = smul.u32 4, %s22
      %p414 = scmp.lt.s32.totalorder %s413, 7
      %s415 = scalar_select %p414, %s413, 7
      %s416 = smul.addr %s415, 8
      %s417 = scalar_lea.vmem %s1, %s416
      %s418 = smul.u32 4, %s22
      %s419 = smul.u32 4, %s22
      %p420 = scmp.lt.s32.totalorder %s419, 7
      %s421 = scalar_select %p420, %s419, 7
      %s422 = smul.addr %s421, 8
      %s423 = scalar_lea.vmem %s2, %s422
      %s424 = smul.u32 4, %s22
      %s425 = smul.u32 4, %s22
      %p426 = scmp.lt.s32.totalorder %s425, 7
      %s427 = scalar_select %p426, %s425, 7
      %s428 = smul.addr %s427, 8
      %s429 = scalar_lea.vmem %s3, %s428
      %s430 = smul.u32 4, %s22
      %s431 = smul.u32 4, %s22
      %p432 = scmp.lt.s32.totalorder %s431, 7
      %s433 = scalar_select %p432, %s431, 7
      %s434 = smul.addr %s433, 8
      %s435 = scalar_lea.vmem %s9, %s434
      %s436 = smul.u32 4, %s22
      %s437 = smul.u32 4, %s22
      %p438 = scmp.lt.s32.totalorder %s437, 7
      %s439 = scalar_select %p438, %s437, 7
      %s440 = smul.addr %s439, 8
      %s441 = scalar_lea.vmem %s10, %s440
      %s442 = smul.u32 4, %s22
      %v444 = vld [vmem:[%s411] sm:$0xf]
      %v445 = vld [vmem:[%s411 + $0x4] sm:$0xf]
      %v446 = vld [vmem:[%s411 + $0x8] sm:$0xf]
      %v447 = vld [vmem:[%s411 + $0xc] sm:$0xf]
      %v448 = vld [vmem:[%s411 + $0x10] sm:$0xf]
      %v449 = vld [vmem:[%s411 + $0x14] sm:$0xf]
      %v450 = vld [vmem:[%s411 + $0x18] sm:$0xf]
      %v451 = vld [vmem:[%s411 + $0x1c] sm:$0xf]
      %v452 = vld [vmem:[%s411 + $0x20] sm:$0xf]
      %v453 = vld [vmem:[%s411 + $0x24] sm:$0xf]
      %v454 = vld [vmem:[%s411 + $0x28] sm:$0xf]
      %v455 = vld [vmem:[%s411 + $0x2c] sm:$0xf]
      %v456 = vld [vmem:[%s411 + $0x30] sm:$0xf]
      %v457 = vld [vmem:[%s411 + $0x34] sm:$0xf]
      %v458 = vld [vmem:[%s411 + $0x38] sm:$0xf]
      %v459 = vld [vmem:[%s411 + $0x3c] sm:$0xf]
      %v460 = vld [vmem:[%s411 + $0x40] sm:$0xf]
      %v461 = vld [vmem:[%s411 + $0x44] sm:$0xf]
      %v462 = vld [vmem:[%s411 + $0x48] sm:$0xf]
      %v463 = vld [vmem:[%s411 + $0x4c] sm:$0xf]
      %v464 = vld [vmem:[%s411 + $0x50] sm:$0xf]
      %v465 = vld [vmem:[%s411 + $0x54] sm:$0xf]
      %v466 = vld [vmem:[%s411 + $0x58] sm:$0xf]
      %v467 = vld [vmem:[%s411 + $0x5c] sm:$0xf]
      %v468 = vld [vmem:[%s411 + $0x60] sm:$0xf]
      %v469 = vld [vmem:[%s411 + $0x64] sm:$0xf]
      %v470 = vld [vmem:[%s411 + $0x68] sm:$0xf]
      %v471 = vld [vmem:[%s411 + $0x6c] sm:$0xf]
      %v472 = vld [vmem:[%s411 + $0x70] sm:$0xf]
      %v473 = vld [vmem:[%s411 + $0x74] sm:$0xf]
      %v474 = vld [vmem:[%s411 + $0x78] sm:$0xf]
      %v475 = vld [vmem:[%s411 + $0x7c] sm:$0xf]
      %v476 = vld [vmem:[%s4] sm:$0xf]
      %v477 = vld [vmem:[%s4 + $0x4] sm:$0xf]
      %v478 = vld [vmem:[%s4 + $0x8] sm:$0xf]
      %v479 = vld [vmem:[%s4 + $0xc] sm:$0xf]
      %v480 = vld [vmem:[%s4 + $0x10] sm:$0xf]
      %v481 = vld [vmem:[%s4 + $0x14] sm:$0xf]
      %v482 = vld [vmem:[%s4 + $0x18] sm:$0xf]
      %v483 = vld [vmem:[%s4 + $0x1c] sm:$0xf]
      %v484 = vld [vmem:[%s5] sm:$0x1]
      %v486 = vlaneseq
      %v487 = vshrl.u32 %v486, 7
      %v488 = vsub.s32 0, %v487
      %v489 = vrot.slane %v484, %v488
      %v523 = vunpack.c.l.b16 %v444
      %v524 = vunpack.c.l.b16 %v445
      %v525 = vunpack.c.l.b16 %v446
      %v526 = vunpack.c.l.b16 %v447
      %v527 = vunpack.c.l.b16 %v448
      %v528 = vunpack.c.l.b16 %v449
      %v529 = vunpack.c.l.b16 %v450
      %v530 = vunpack.c.l.b16 %v451
      %v531 = vunpack.c.l.b16 %v452
      %v532 = vunpack.c.l.b16 %v453
      %v533 = vunpack.c.l.b16 %v454
      %v534 = vunpack.c.l.b16 %v455
      %v535 = vunpack.c.l.b16 %v456
      %v536 = vunpack.c.l.b16 %v457
      %v537 = vunpack.c.l.b16 %v458
      %v538 = vunpack.c.l.b16 %v459
      %v539 = vunpack.c.l.b16 %v460
      %v540 = vunpack.c.l.b16 %v461
      %v541 = vunpack.c.l.b16 %v462
      %v542 = vunpack.c.l.b16 %v463
      %v543 = vunpack.c.l.b16 %v464
      %v544 = vunpack.c.l.b16 %v465
      %v545 = vunpack.c.l.b16 %v466
      %v546 = vunpack.c.l.b16 %v467
      %v547 = vunpack.c.l.b16 %v468
      %v548 = vunpack.c.l.b16 %v469
      %v549 = vunpack.c.l.b16 %v470
      %v550 = vunpack.c.l.b16 %v471
      %v551 = vunpack.c.l.b16 %v472
      %v552 = vunpack.c.l.b16 %v473
      %v553 = vunpack.c.l.b16 %v474
      %v554 = vunpack.c.l.b16 %v475
      %v555 = vpack.c.b16 %v524, %v523
      %v556 = vpack.c.b16 %v526, %v525
      %v557 = vpack.c.b16 %v528, %v527
      %v558 = vpack.c.b16 %v530, %v529
      %v559 = vpack.c.b16 %v532, %v531
      %v560 = vpack.c.b16 %v534, %v533
      %v561 = vpack.c.b16 %v536, %v535
      %v562 = vpack.c.b16 %v538, %v537
      %v563 = vpack.c.b16 %v540, %v539
      %v564 = vpack.c.b16 %v542, %v541
      %v565 = vpack.c.b16 %v544, %v543
      %v566 = vpack.c.b16 %v546, %v545
      %v567 = vpack.c.b16 %v548, %v547
      %v568 = vpack.c.b16 %v550, %v549
      %v569 = vpack.c.b16 %v552, %v551
      %v570 = vpack.c.b16 %v554, %v553
      %v579 = vunpack.c.l.b16 %v476
      %v580 = vunpack.c.l.b16 %v477
      %v581 = vunpack.c.l.b16 %v478
      %v582 = vunpack.c.l.b16 %v479
      %v583 = vunpack.c.l.b16 %v480
      %v584 = vunpack.c.l.b16 %v481
      %v585 = vunpack.c.l.b16 %v482
      %v586 = vunpack.c.l.b16 %v483
      %v587 = vpack.c.b16 %v580, %v579
      %v588 = vpack.c.b16 %v582, %v581
      %v589 = vpack.c.b16 %v584, %v583
      %v590 = vpack.c.b16 %v586, %v585
      %vm595 = vcmask 523264
      %v597 = vsel %vm595, %v555, 0
      %v600 = vsel %vm595, %v556, 0
      %v603 = vsel %vm595, %v557, 0
      %v606 = vsel %vm595, %v558, 0
      %v609 = vsel %vm595, %v559, 0
      %v612 = vsel %vm595, %v560, 0
      %v615 = vsel %vm595, %v561, 0
      %v618 = vsel %vm595, %v562, 0
      %v621 = vsel %vm595, %v563, 0
      %v624 = vsel %vm595, %v564, 0
      %v627 = vsel %vm595, %v565, 0
      %v630 = vsel %vm595, %v566, 0
      %v633 = vsel %vm595, %v567, 0
      %v636 = vsel %vm595, %v568, 0
      %v639 = vsel %vm595, %v569, 0
      %v642 = vsel %vm595, %v570, 0
      %644 = vmatprep.subr.bf16.mxu0 0
      %645 = vmatpush1.bf16.msra.mxu0 %v587
      %646 = vmatprep.subr.bf16.mxu0 0
      %647 = vmatpush1.bf16.msra.mxu0 %v588
      %648 = vmatprep.subr.bf16.mxu0 0
      %649 = vmatpush1.bf16.msra.mxu0 %v589
      %650 = vmatprep.subr.bf16.mxu0 0
      %651 = vmatpush1.bf16.msra.mxu0 %v590
      %652 = vmatprep.subr.bf16.mxu0 0
      %653 = vmatpush1.bf16.msra.mxu0 0
      %654 = vmatprep.subr.bf16.mxu0 0
      %655 = vmatpush1.bf16.msra.mxu0 0
      %656 = vmatprep.subr.bf16.mxu0 0
      %657 = vmatpush1.bf16.msra.mxu0 0
      %658 = vmatprep.subr.bf16.mxu0 0
      %659 = vmatpush1.bf16.msra.mxu0 0
      %660 = vmatprep.subr.bf16.mxu0 0
      %661 = vmatpush1.bf16.msra.mxu0 0
      %662 = vmatprep.subr.bf16.mxu0 0
      %663 = vmatpush1.bf16.msra.mxu0 0
      %664 = vmatprep.subr.bf16.mxu0 0
      %665 = vmatpush1.bf16.msra.mxu0 0
      %666 = vmatprep.subr.bf16.mxu0 0
      %667 = vmatpush1.bf16.msra.mxu0 0
      %668 = vmatprep.subr.bf16.mxu0 0
      %669 = vmatpush1.bf16.msra.mxu0 0
      %670 = vmatprep.subr.bf16.mxu0 0
      %671 = vmatpush1.bf16.msra.mxu0 0
      %672 = vmatprep.subr.bf16.mxu0 0
      %673 = vmatpush1.bf16.msra.mxu0 0
      %674 = vmatprep.subr.bf16.mxu0 0
      %675 = vmatpush1.bf16.msra.mxu0 0
      %676 = vmatprep.mubr.bf16.mxu0 0
      %677 = vmatmul.mubr.bf16.gmra.mrb[0].mxu0 %v597
      %v678 = vpop.f32.mrb[0].mxu0
      %v679 = vadd.f32 %v489, %v678
      %v680 = vpop.f32.mrb[0].mxu0
      %v681 = vpop.f32.mrb[0].mxu0
      %v682 = vadd.f32 %v489, %v681
      %v683 = vpop.f32.mrb[0].mxu0
      %684 = vmatprep.mubr.bf16.mxu0 0
      %685 = vmatmul.mubr.bf16.gmra.mrb[0].mxu0 %v600
      %v686 = vpop.f32.mrb[0].mxu0
      %v687 = vadd.f32 %v489, %v686
      %v688 = vpop.f32.mrb[0].mxu0
      %v689 = vpop.f32.mrb[0].mxu0
      %v690 = vadd.f32 %v489, %v689
      %v691 = vpop.f32.mrb[0].mxu0
      %692 = vmatprep.mubr.bf16.mxu0 0
      %693 = vmatmul.mubr.bf16.gmra.mrb[0].mxu0 %v603
      %v694 = vpop.f32.mrb[0].mxu0
      %v695 = vadd.f32 %v489, %v694
      %v696 = vpop.f32.mrb[0].mxu0
      %v697 = vpop.f32.mrb[0].mxu0
      %v698 = vadd.f32 %v489, %v697
      %v699 = vpop.f32.mrb[0].mxu0
      %700 = vmatprep.mubr.bf16.mxu0 0
      %701 = vmatmul.mubr.bf16.gmra.mrb[0].mxu0 %v606
      %v702 = vpop.f32.mrb[0].mxu0
      %v703 = vadd.f32 %v489, %v702
      %v704 = vpop.f32.mrb[0].mxu0
      %v705 = vpop.f32.mrb[0].mxu0
      %v706 = vadd.f32 %v489, %v705
      %v707 = vpop.f32.mrb[0].mxu0
      %708 = vmatprep.mubr.bf16.mxu0 0
      %709 = vmatmul.mubr.bf16.gmra.mrb[0].mxu0 %v609
      %v710 = vpop.f32.mrb[0].mxu0
      %v711 = vadd.f32 %v489, %v710
      %v712 = vpop.f32.mrb[0].mxu0
      %v713 = vpop.f32.mrb[0].mxu0
      %v714 = vadd.f32 %v489, %v713
      %v715 = vpop.f32.mrb[0].mxu0
      %716 = vmatprep.mubr.bf16.mxu0 0
      %717 = vmatmul.mubr.bf16.gmra.mrb[0].mxu0 %v612
      %v718 = vpop.f32.mrb[0].mxu0
      %v719 = vadd.f32 %v489, %v718
      %v720 = vpop.f32.mrb[0].mxu0
      %v721 = vpop.f32.mrb[0].mxu0
      %v722 = vadd.f32 %v489, %v721
      %v723 = vpop.f32.mrb[0].mxu0
      %724 = vmatprep.mubr.bf16.mxu0 0
      %725 = vmatmul.mubr.bf16.gmra.mrb[0].mxu0 %v615
      %v726 = vpop.f32.mrb[0].mxu0
      %v727 = vadd.f32 %v489, %v726
      %v728 = vpop.f32.mrb[0].mxu0
      %v729 = vpop.f32.mrb[0].mxu0
      %v730 = vadd.f32 %v489, %v729
      %v731 = vpop.f32.mrb[0].mxu0
      %732 = vmatprep.mubr.bf16.mxu0 0
      %733 = vmatmul.mubr.bf16.gmra.mrb[0].mxu0 %v618
      %v734 = vpop.f32.mrb[0].mxu0
      %v735 = vadd.f32 %v489, %v734
      %v736 = vpop.f32.mrb[0].mxu0
      %v737 = vpop.f32.mrb[0].mxu0
      %v738 = vadd.f32 %v489, %v737
      %v739 = vpop.f32.mrb[0].mxu0
      %740 = vmatprep.mubr.bf16.mxu0 0
      %741 = vmatmul.mubr.bf16.gmra.mrb[0].mxu0 %v621
      %v742 = vpop.f32.mrb[0].mxu0
      %v743 = vadd.f32 %v489, %v742
      %v744 = vpop.f32.mrb[0].mxu0
      %v745 = vpop.f32.mrb[0].mxu0
      %v746 = vadd.f32 %v489, %v745
      %v747 = vpop.f32.mrb[0].mxu0
      %748 = vmatprep.mubr.bf16.mxu0 0
      %749 = vmatmul.mubr.bf16.gmra.mrb[0].mxu0 %v624
      %v750 = vpop.f32.mrb[0].mxu0
      %v751 = vadd.f32 %v489, %v750
      %v752 = vpop.f32.mrb[0].mxu0
      %v753 = vpop.f32.mrb[0].mxu0
      %v754 = vadd.f32 %v489, %v753
      %v755 = vpop.f32.mrb[0].mxu0
      %756 = vmatprep.mubr.bf16.mxu0 0
      %757 = vmatmul.mubr.bf16.gmra.mrb[0].mxu0 %v627
      %v758 = vpop.f32.mrb[0].mxu0
      %v759 = vadd.f32 %v489, %v758
      %v760 = vpop.f32.mrb[0].mxu0
      %v761 = vpop.f32.mrb[0].mxu0
      %v762 = vadd.f32 %v489, %v761
      %v763 = vpop.f32.mrb[0].mxu0
      %764 = vmatprep.mubr.bf16.mxu0 0
      %765 = vmatmul.mubr.bf16.gmra.mrb[0].mxu0 %v630
      %v766 = vpop.f32.mrb[0].mxu0
      %v767 = vadd.f32 %v489, %v766
      %v768 = vpop.f32.mrb[0].mxu0
      %v769 = vpop.f32.mrb[0].mxu0
      %v770 = vadd.f32 %v489, %v769
      %v771 = vpop.f32.mrb[0].mxu0
      %772 = vmatprep.mubr.bf16.mxu0 0
      %773 = vmatmul.mubr.bf16.gmra.mrb[0].mxu0 %v633
      %v774 = vpop.f32.mrb[0].mxu0
      %v775 = vadd.f32 %v489, %v774
      %v776 = vpop.f32.mrb[0].mxu0
      %v777 = vpop.f32.mrb[0].mxu0
      %v778 = vadd.f32 %v489, %v777
      %v779 = vpop.f32.mrb[0].mxu0
      %780 = vmatprep.mubr.bf16.mxu0 0
      %781 = vmatmul.mubr.bf16.gmra.mrb[0].mxu0 %v636
      %v782 = vpop.f32.mrb[0].mxu0
      %v783 = vadd.f32 %v489, %v782
      %v784 = vpop.f32.mrb[0].mxu0
      %v785 = vpop.f32.mrb[0].mxu0
      %v786 = vadd.f32 %v489, %v785
      %v787 = vpop.f32.mrb[0].mxu0
      %788 = vmatprep.mubr.bf16.mxu0 0
      %789 = vmatmul.mubr.bf16.gmra.mrb[0].mxu0 %v639
      %v790 = vpop.f32.mrb[0].mxu0
      %v791 = vadd.f32 %v489, %v790
      %v792 = vpop.f32.mrb[0].mxu0
      %v793 = vpop.f32.mrb[0].mxu0
      %v794 = vadd.f32 %v489, %v793
      %v795 = vpop.f32.mrb[0].mxu0
      %796 = vmatprep.mubr.bf16.mxu0 0
      %797 = vmatmul.mubr.bf16.gmra.mrb[0].mxu0 %v642
      %v798 = vpop.f32.mrb[0].mxu0
      %v799 = vadd.f32 %v489, %v798
      %v800 = vpop.f32.mrb[0].mxu0
      %v801 = vpop.f32.mrb[0].mxu0
      %v802 = vadd.f32 %v489, %v801
      %v803 = vpop.f32.mrb[0].mxu0
      %804 = vdwg.mxu0
      %v805 = vmax.f32 %v679, 0.0
      %v806 = vmax.f32 %v682, 0.0
      %v807 = vmax.f32 %v687, 0.0
      %v808 = vmax.f32 %v690, 0.0
      %v809 = vmax.f32 %v695, 0.0
      %v810 = vmax.f32 %v698, 0.0
      %v811 = vmax.f32 %v703, 0.0
      %v812 = vmax.f32 %v706, 0.0
      %v813 = vmax.f32 %v711, 0.0
      %v814 = vmax.f32 %v714, 0.0
      %v815 = vmax.f32 %v719, 0.0
      %v816 = vmax.f32 %v722, 0.0
      %v817 = vmax.f32 %v727, 0.0
      %v818 = vmax.f32 %v730, 0.0
      %v819 = vmax.f32 %v735, 0.0
      %v820 = vmax.f32 %v738, 0.0
      %v821 = vmax.f32 %v743, 0.0
      %v822 = vmax.f32 %v746, 0.0
      %v823 = vmax.f32 %v751, 0.0
      %v824 = vmax.f32 %v754, 0.0
      %v825 = vmax.f32 %v759, 0.0
      %v826 = vmax.f32 %v762, 0.0
      %v827 = vmax.f32 %v767, 0.0
      %v828 = vmax.f32 %v770, 0.0
      %v829 = vmax.f32 %v775, 0.0
      %v830 = vmax.f32 %v778, 0.0
      %v831 = vmax.f32 %v783, 0.0
      %v832 = vmax.f32 %v786, 0.0
      %v833 = vmax.f32 %v791, 0.0
      %v834 = vmax.f32 %v794, 0.0
      %v835 = vmax.f32 %v799, 0.0
      %v836 = vmax.f32 %v802, 0.0
      %v837 = vld [vmem:[%s417] sm:$0xff]
      %v838 = vld [vmem:[%s417 + $0x8] sm:$0xff]
      %v839 = vld [vmem:[%s417 + $0x10] sm:$0xff]
      %v840 = vld [vmem:[%s417 + $0x18] sm:$0xff]
      %v845 = vcombine.high %v837, %v837
      %v847 = vunpack.c.l.s4 1966171168
      %v848 = vunpack.c.0.s8 %v847
      %v849 = vlaneseq
      %v850 = vshrl.u32 %v849, 7
      %v851 = vsub.s32 %v848, %v850
      %v852 = vrot.slane %v837, %v851
      %v854 = vunpack.c.l.s4 1966171168
      %v855 = vunpack.c.0.s8 %v854
      %v856 = vlaneseq
      %v857 = vshrl.u32 %v856, 7
      %v858 = vsub.s32 %v855, %v857
      %v859 = vrot.slane %v845, %v858
      %v860 = vcombine.high %v852, %v852
      %v861 = vcombine.high %v859, %v859
      %v863 = vunpack.c.l.s4 1966171168
      %v864 = vunpack.c.0.s8 %v863
      %v865 = vlaneseq
      %v866 = vshrl.u32 %v865, 7
      %v867 = vsub.s32 %v864, %v866
      %v868 = vrot.slane %v852, %v867
      %v870 = vunpack.c.l.s4 1966171168
      %v871 = vunpack.c.0.s8 %v870
      %v872 = vlaneseq
      %v873 = vshrl.u32 %v872, 7
      %v874 = vsub.s32 %v871, %v873
      %v875 = vrot.slane %v859, %v874
      %v877 = vunpack.c.l.s4 1966171168
      %v878 = vunpack.c.0.s8 %v877
      %v879 = vlaneseq
      %v880 = vshrl.u32 %v879, 7
      %v881 = vsub.s32 %v878, %v880
      %v882 = vrot.slane %v860, %v881
      %v884 = vunpack.c.l.s4 1966171168
      %v885 = vunpack.c.0.s8 %v884
      %v886 = vlaneseq
      %v887 = vshrl.u32 %v886, 7
      %v888 = vsub.s32 %v885, %v887
      %v889 = vrot.slane %v861, %v888
      %v890 = vcombine.high %v868, %v868
      %v891 = vcombine.high %v875, %v875
      %v892 = vcombine.high %v882, %v882
      %v893 = vcombine.high %v889, %v889
      %v894 = vcombine.high %v838, %v838
      %v896 = vunpack.c.l.s4 1966171168
      %v897 = vunpack.c.0.s8 %v896
      %v898 = vlaneseq
      %v899 = vshrl.u32 %v898, 7
      %v900 = vsub.s32 %v897, %v899
      %v901 = vrot.slane %v838, %v900
      %v903 = vunpack.c.l.s4 1966171168
      %v904 = vunpack.c.0.s8 %v903
      %v905 = vlaneseq
      %v906 = vshrl.u32 %v905, 7
      %v907 = vsub.s32 %v904, %v906
      %v908 = vrot.slane %v894, %v907
      %v909 = vcombine.high %v901, %v901
      %v910 = vcombine.high %v908, %v908
      %v912 = vunpack.c.l.s4 1966171168
      %v913 = vunpack.c.0.s8 %v912
      %v914 = vlaneseq
      %v915 = vshrl.u32 %v914, 7
      %v916 = vsub.s32 %v913, %v915
      %v917 = vrot.slane %v901, %v916
      %v919 = vunpack.c.l.s4 1966171168
      %v920 = vunpack.c.0.s8 %v919
      %v921 = vlaneseq
      %v922 = vshrl.u32 %v921, 7
      %v923 = vsub.s32 %v920, %v922
      %v924 = vrot.slane %v908, %v923
      %v926 = vunpack.c.l.s4 1966171168
      %v927 = vunpack.c.0.s8 %v926
      %v928 = vlaneseq
      %v929 = vshrl.u32 %v928, 7
      %v930 = vsub.s32 %v927, %v929
      %v931 = vrot.slane %v909, %v930
      %v933 = vunpack.c.l.s4 1966171168
      %v934 = vunpack.c.0.s8 %v933
      %v935 = vlaneseq
      %v936 = vshrl.u32 %v935, 7
      %v937 = vsub.s32 %v934, %v936
      %v938 = vrot.slane %v910, %v937
      %v939 = vcombine.high %v917, %v917
      %v940 = vcombine.high %v924, %v924
      %v941 = vcombine.high %v931, %v931
      %v942 = vcombine.high %v938, %v938
      %v943 = vcombine.high %v839, %v839
      %v945 = vunpack.c.l.s4 1966171168
      %v946 = vunpack.c.0.s8 %v945
      %v947 = vlaneseq
      %v948 = vshrl.u32 %v947, 7
      %v949 = vsub.s32 %v946, %v948
      %v950 = vrot.slane %v839, %v949
      %v952 = vunpack.c.l.s4 1966171168
      %v953 = vunpack.c.0.s8 %v952
      %v954 = vlaneseq
      %v955 = vshrl.u32 %v954, 7
      %v956 = vsub.s32 %v953, %v955
      %v957 = vrot.slane %v943, %v956
      %v958 = vcombine.high %v950, %v950
      %v959 = vcombine.high %v957, %v957
      %v961 = vunpack.c.l.s4 1966171168
      %v962 = vunpack.c.0.s8 %v961
      %v963 = vlaneseq
      %v964 = vshrl.u32 %v963, 7
      %v965 = vsub.s32 %v962, %v964
      %v966 = vrot.slane %v950, %v965
      %v968 = vunpack.c.l.s4 1966171168
      %v969 = vunpack.c.0.s8 %v968
      %v970 = vlaneseq
      %v971 = vshrl.u32 %v970, 7
      %v972 = vsub.s32 %v969, %v971
      %v973 = vrot.slane %v957, %v972
      %v975 = vunpack.c.l.s4 1966171168
      %v976 = vunpack.c.0.s8 %v975
      %v977 = vlaneseq
      %v978 = vshrl.u32 %v977, 7
      %v979 = vsub.s32 %v976, %v978
      %v980 = vrot.slane %v958, %v979
      %v982 = vunpack.c.l.s4 1966171168
      %v983 = vunpack.c.0.s8 %v982
      %v984 = vlaneseq
      %v985 = vshrl.u32 %v984, 7
      %v986 = vsub.s32 %v983, %v985
      %v987 = vrot.slane %v959, %v986
      %v988 = vcombine.high %v966, %v966
      %v989 = vcombine.high %v973, %v973
      %v990 = vcombine.high %v980, %v980
      %v991 = vcombine.high %v987, %v987
      %v992 = vcombine.high %v840, %v840
      %v994 = vunpack.c.l.s4 1966171168
      %v995 = vunpack.c.0.s8 %v994
      %v996 = vlaneseq
      %v997 = vshrl.u32 %v996, 7
      %v998 = vsub.s32 %v995, %v997
      %v999 = vrot.slane %v840, %v998
      %v1001 = vunpack.c.l.s4 1966171168
      %v1002 = vunpack.c.0.s8 %v1001
      %v1003 = vlaneseq
      %v1004 = vshrl.u32 %v1003, 7
      %v1005 = vsub.s32 %v1002, %v1004
      %v1006 = vrot.slane %v992, %v1005
      %v1007 = vcombine.high %v999, %v999
      %v1008 = vcombine.high %v1006, %v1006
      %v1010 = vunpack.c.l.s4 1966171168
      %v1011 = vunpack.c.0.s8 %v1010
      %v1012 = vlaneseq
      %v1013 = vshrl.u32 %v1012, 7
      %v1014 = vsub.s32 %v1011, %v1013
      %v1015 = vrot.slane %v999, %v1014
      %v1017 = vunpack.c.l.s4 1966171168
      %v1018 = vunpack.c.0.s8 %v1017
      %v1019 = vlaneseq
      %v1020 = vshrl.u32 %v1019, 7
      %v1021 = vsub.s32 %v1018, %v1020
      %v1022 = vrot.slane %v1006, %v1021
      %v1024 = vunpack.c.l.s4 1966171168
      %v1025 = vunpack.c.0.s8 %v1024
      %v1026 = vlaneseq
      %v1027 = vshrl.u32 %v1026, 7
      %v1028 = vsub.s32 %v1025, %v1027
      %v1029 = vrot.slane %v1007, %v1028
      %v1031 = vunpack.c.l.s4 1966171168
      %v1032 = vunpack.c.0.s8 %v1031
      %v1033 = vlaneseq
      %v1034 = vshrl.u32 %v1033, 7
      %v1035 = vsub.s32 %v1032, %v1034
      %v1036 = vrot.slane %v1008, %v1035
      %v1037 = vcombine.high %v1015, %v1015
      %v1038 = vcombine.high %v1022, %v1022
      %v1039 = vcombine.high %v1029, %v1029
      %v1040 = vcombine.high %v1036, %v1036
      %v1041 = vlaneseq
      %v1042 = vshrl.u32 %v1041, 7
      %v1043 = vsub.s32 0, %v1042
      %v1044 = vrot.slane %v868, %v1043
      %v1045 = vlaneseq
      %v1046 = vshrl.u32 %v1045, 7
      %v1047 = vsub.s32 0, %v1046
      %v1048 = vrot.slane %v882, %v1047
      %v1049 = vlaneseq
      %v1050 = vshrl.u32 %v1049, 7
      %v1051 = vsub.s32 0, %v1050
      %v1052 = vrot.slane %v890, %v1051
      %v1053 = vlaneseq
      %v1054 = vshrl.u32 %v1053, 7
      %v1055 = vsub.s32 0, %v1054
      %v1056 = vrot.slane %v892, %v1055
      %v1057 = vlaneseq
      %v1058 = vshrl.u32 %v1057, 7
      %v1059 = vsub.s32 0, %v1058
      %v1060 = vrot.slane %v875, %v1059
      %v1061 = vlaneseq
      %v1062 = vshrl.u32 %v1061, 7
      %v1063 = vsub.s32 0, %v1062
      %v1064 = vrot.slane %v889, %v1063
      %v1065 = vlaneseq
      %v1066 = vshrl.u32 %v1065, 7
      %v1067 = vsub.s32 0, %v1066
      %v1068 = vrot.slane %v891, %v1067
      %v1069 = vlaneseq
      %v1070 = vshrl.u32 %v1069, 7
      %v1071 = vsub.s32 0, %v1070
      %v1072 = vrot.slane %v893, %v1071
      %v1073 = vlaneseq
      %v1074 = vshrl.u32 %v1073, 7
      %v1075 = vsub.s32 0, %v1074
      %v1076 = vrot.slane %v917, %v1075
      %v1077 = vlaneseq
      %v1078 = vshrl.u32 %v1077, 7
      %v1079 = vsub.s32 0, %v1078
      %v1080 = vrot.slane %v931, %v1079
      %v1081 = vlaneseq
      %v1082 = vshrl.u32 %v1081, 7
      %v1083 = vsub.s32 0, %v1082
      %v1084 = vrot.slane %v939, %v1083
      %v1085 = vlaneseq
      %v1086 = vshrl.u32 %v1085, 7
      %v1087 = vsub.s32 0, %v1086
      %v1088 = vrot.slane %v941, %v1087
      %v1089 = vlaneseq
      %v1090 = vshrl.u32 %v1089, 7
      %v1091 = vsub.s32 0, %v1090
      %v1092 = vrot.slane %v924, %v1091
      %v1093 = vlaneseq
      %v1094 = vshrl.u32 %v1093, 7
      %v1095 = vsub.s32 0, %v1094
      %v1096 = vrot.slane %v938, %v1095
      %v1097 = vlaneseq
      %v1098 = vshrl.u32 %v1097, 7
      %v1099 = vsub.s32 0, %v1098
      %v1100 = vrot.slane %v940, %v1099
      %v1101 = vlaneseq
      %v1102 = vshrl.u32 %v1101, 7
      %v1103 = vsub.s32 0, %v1102
      %v1104 = vrot.slane %v942, %v1103
      %v1105 = vlaneseq
      %v1106 = vshrl.u32 %v1105, 7
      %v1107 = vsub.s32 0, %v1106
      %v1108 = vrot.slane %v966, %v1107
      %v1109 = vlaneseq
      %v1110 = vshrl.u32 %v1109, 7
      %v1111 = vsub.s32 0, %v1110
      %v1112 = vrot.slane %v980, %v1111
      %v1113 = vlaneseq
      %v1114 = vshrl.u32 %v1113, 7
      %v1115 = vsub.s32 0, %v1114
      %v1116 = vrot.slane %v988, %v1115
      %v1117 = vlaneseq
      %v1118 = vshrl.u32 %v1117, 7
      %v1119 = vsub.s32 0, %v1118
      %v1120 = vrot.slane %v990, %v1119
      %v1121 = vlaneseq
      %v1122 = vshrl.u32 %v1121, 7
      %v1123 = vsub.s32 0, %v1122
      %v1124 = vrot.slane %v973, %v1123
      %v1125 = vlaneseq
      %v1126 = vshrl.u32 %v1125, 7
      %v1127 = vsub.s32 0, %v1126
      %v1128 = vrot.slane %v987, %v1127
      %v1129 = vlaneseq
      %v1130 = vshrl.u32 %v1129, 7
      %v1131 = vsub.s32 0, %v1130
      %v1132 = vrot.slane %v989, %v1131
      %v1133 = vlaneseq
      %v1134 = vshrl.u32 %v1133, 7
      %v1135 = vsub.s32 0, %v1134
      %v1136 = vrot.slane %v991, %v1135
      %v1137 = vlaneseq
      %v1138 = vshrl.u32 %v1137, 7
      %v1139 = vsub.s32 0, %v1138
      %v1140 = vrot.slane %v1015, %v1139
      %v1141 = vlaneseq
      %v1142 = vshrl.u32 %v1141, 7
      %v1143 = vsub.s32 0, %v1142
      %v1144 = vrot.slane %v1029, %v1143
      %v1145 = vlaneseq
      %v1146 = vshrl.u32 %v1145, 7
      %v1147 = vsub.s32 0, %v1146
      %v1148 = vrot.slane %v1037, %v1147
      %v1149 = vlaneseq
      %v1150 = vshrl.u32 %v1149, 7
      %v1151 = vsub.s32 0, %v1150
      %v1152 = vrot.slane %v1039, %v1151
      %v1153 = vlaneseq
      %v1154 = vshrl.u32 %v1153, 7
      %v1155 = vsub.s32 0, %v1154
      %v1156 = vrot.slane %v1022, %v1155
      %v1157 = vlaneseq
      %v1158 = vshrl.u32 %v1157, 7
      %v1159 = vsub.s32 0, %v1158
      %v1160 = vrot.slane %v1036, %v1159
      %v1161 = vlaneseq
      %v1162 = vshrl.u32 %v1161, 7
      %v1163 = vsub.s32 0, %v1162
      %v1164 = vrot.slane %v1038, %v1163
      %v1165 = vlaneseq
      %v1166 = vshrl.u32 %v1165, 7
      %v1167 = vsub.s32 0, %v1166
      %v1168 = vrot.slane %v1040, %v1167
      %v1201 = vpack.c.bf16 %v806, %v805
      %v1202 = vpack.c.bf16 %v808, %v807
      %v1203 = vpack.c.bf16 %v810, %v809
      %v1204 = vpack.c.bf16 %v812, %v811
      %v1205 = vpack.c.bf16 %v814, %v813
      %v1206 = vpack.c.bf16 %v816, %v815
      %v1207 = vpack.c.bf16 %v818, %v817
      %v1208 = vpack.c.bf16 %v820, %v819
      %v1209 = vpack.c.bf16 %v822, %v821
      %v1210 = vpack.c.bf16 %v824, %v823
      %v1211 = vpack.c.bf16 %v826, %v825
      %v1212 = vpack.c.bf16 %v828, %v827
      %v1213 = vpack.c.bf16 %v830, %v829
      %v1214 = vpack.c.bf16 %v832, %v831
      %v1215 = vpack.c.bf16 %v834, %v833
      %v1216 = vpack.c.bf16 %v836, %v835
      %v1217 = vld [vmem:[%s6] sm:$0xf]
      %v1218 = vld [vmem:[%s6 + $0x4] sm:$0xf]
      %v1219 = vld [vmem:[%s6 + $0x8] sm:$0xf]
      %v1220 = vld [vmem:[%s6 + $0xc] sm:$0xf]
      %v1225 = vunpack.c.l.b16 %v1217
      %v1226 = vunpack.c.l.b16 %v1218
      %v1227 = vunpack.c.l.b16 %v1219
      %v1228 = vunpack.c.l.b16 %v1220
      %v1229 = vpack.c.b16 %v1226, %v1225
      %v1230 = vpack.c.b16 %v1228, %v1227
      %vm1233 = vcmask 261120
      %v1235 = vsel %vm1233, %v1201, 0
      %v1238 = vsel %vm1233, %v1202, 0
      %v1241 = vsel %vm1233, %v1203, 0
      %v1244 = vsel %vm1233, %v1204, 0
      %v1247 = vsel %vm1233, %v1205, 0
      %v1250 = vsel %vm1233, %v1206, 0
      %v1253 = vsel %vm1233, %v1207, 0
      %v1256 = vsel %vm1233, %v1208, 0
      %v1259 = vsel %vm1233, %v1209, 0
      %v1262 = vsel %vm1233, %v1210, 0
      %v1265 = vsel %vm1233, %v1211, 0
      %v1268 = vsel %vm1233, %v1212, 0
      %v1271 = vsel %vm1233, %v1213, 0
      %v1274 = vsel %vm1233, %v1214, 0
      %v1277 = vsel %vm1233, %v1215, 0
      %v1280 = vsel %vm1233, %v1216, 0
      %1282 = vmatprep.subr.bf16.mxu0 0
      %1283 = vmatpush1.bf16.msra.mxu0 %v1229
      %1284 = vmatprep.subr.bf16.mxu0 0
      %1285 = vmatpush1.bf16.msra.mxu0 %v1230
      %1286 = vmatprep.subr.bf16.mxu0 0
      %1287 = vmatpush1.bf16.msra.mxu0 0
      %1288 = vmatprep.subr.bf16.mxu0 0
      %1289 = vmatpush1.bf16.msra.mxu0 0
      %1290 = vmatprep.subr.bf16.mxu0 0
      %1291 = vmatpush1.bf16.msra.mxu0 0
      %1292 = vmatprep.subr.bf16.mxu0 0
      %1293 = vmatpush1.bf16.msra.mxu0 0
      %1294 = vmatprep.subr.bf16.mxu0 0
      %1295 = vmatpush1.bf16.msra.mxu0 0
      %1296 = vmatprep.subr.bf16.mxu0 0
      %1297 = vmatpush1.bf16.msra.mxu0 0
      %1298 = vmatprep.subr.bf16.mxu0 0
      %1299 = vmatpush1.bf16.msra.mxu0 0
      %1300 = vmatprep.subr.bf16.mxu0 0
      %1301 = vmatpush1.bf16.msra.mxu0 0
      %1302 = vmatprep.subr.bf16.mxu0 0
      %1303 = vmatpush1.bf16.msra.mxu0 0
      %1304 = vmatprep.subr.bf16.mxu0 0
      %1305 = vmatpush1.bf16.msra.mxu0 0
      %1306 = vmatprep.subr.bf16.mxu0 0
      %1307 = vmatpush1.bf16.msra.mxu0 0
      %1308 = vmatprep.subr.bf16.mxu0 0
      %1309 = vmatpush1.bf16.msra.mxu0 0
      %1310 = vmatprep.subr.bf16.mxu0 0
      %1311 = vmatpush1.bf16.msra.mxu0 0
      %1312 = vmatprep.subr.bf16.mxu0 0
      %1313 = vmatpush1.bf16.msra.mxu0 0
      %1314 = vmatprep.mubr.bf16.mxu0 0
      %1315 = vmatmul.mubr.bf16.gmra.mrb[0].mxu0 %v1235
      %v1316 = vpop.f32.mrb[0].mxu0
      %v1317 = vadd.f32 %v1044, %v1316
      %v1318 = vpop.f32.mrb[0].mxu0
      %v1319 = vpop.f32.mrb[0].mxu0
      %v1320 = vadd.f32 %v1048, %v1319
      %v1321 = vpop.f32.mrb[0].mxu0
      %1322 = vmatprep.mubr.bf16.mxu0 0
      %1323 = vmatmul.mubr.bf16.gmra.mrb[0].mxu0 %v1238
      %v1324 = vpop.f32.mrb[0].mxu0
      %v1325 = vadd.f32 %v1052, %v1324
      %v1326 = vpop.f32.mrb[0].mxu0
      %v1327 = vpop.f32.mrb[0].mxu0
      %v1328 = vadd.f32 %v1056, %v1327
      %v1329 = vpop.f32.mrb[0].mxu0
      %1330 = vmatprep.mubr.bf16.mxu0 0
      %1331 = vmatmul.mubr.bf16.gmra.mrb[0].mxu0 %v1241
      %v1332 = vpop.f32.mrb[0].mxu0
      %v1333 = vadd.f32 %v1060, %v1332
      %v1334 = vpop.f32.mrb[0].mxu0
      %v1335 = vpop.f32.mrb[0].mxu0
      %v1336 = vadd.f32 %v1064, %v1335
      %v1337 = vpop.f32.mrb[0].mxu0
      %1338 = vmatprep.mubr.bf16.mxu0 0
      %1339 = vmatmul.mubr.bf16.gmra.mrb[0].mxu0 %v1244
      %v1340 = vpop.f32.mrb[0].mxu0
      %v1341 = vadd.f32 %v1068, %v1340
      %v1342 = vpop.f32.mrb[0].mxu0
      %v1343 = vpop.f32.mrb[0].mxu0
      %v1344 = vadd.f32 %v1072, %v1343
      %v1345 = vpop.f32.mrb[0].mxu0
      %1346 = vmatprep.mubr.bf16.mxu0 0
      %1347 = vmatmul.mubr.bf16.gmra.mrb[0].mxu0 %v1247
      %v1348 = vpop.f32.mrb[0].mxu0
      %v1349 = vadd.f32 %v1076, %v1348
      %v1350 = vpop.f32.mrb[0].mxu0
      %v1351 = vpop.f32.mrb[0].mxu0
      %v1352 = vadd.f32 %v1080, %v1351
      %v1353 = vpop.f32.mrb[0].mxu0
      %1354 = vmatprep.mubr.bf16.mxu0 0
      %1355 = vmatmul.mubr.bf16.gmra.mrb[0].mxu0 %v1250
      %v1356 = vpop.f32.mrb[0].mxu0
      %v1357 = vadd.f32 %v1084, %v1356
      %v1358 = vpop.f32.mrb[0].mxu0
      %v1359 = vpop.f32.mrb[0].mxu0
      %v1360 = vadd.f32 %v1088, %v1359
      %v1361 = vpop.f32.mrb[0].mxu0
      %1362 = vmatprep.mubr.bf16.mxu0 0
      %1363 = vmatmul.mubr.bf16.gmra.mrb[0].mxu0 %v1253
      %v1364 = vpop.f32.mrb[0].mxu0
      %v1365 = vadd.f32 %v1092, %v1364
      %v1366 = vpop.f32.mrb[0].mxu0
      %v1367 = vpop.f32.mrb[0].mxu0
      %v1368 = vadd.f32 %v1096, %v1367
      %v1369 = vpop.f32.mrb[0].mxu0
      %1370 = vmatprep.mubr.bf16.mxu0 0
      %1371 = vmatmul.mubr.bf16.gmra.mrb[0].mxu0 %v1256
      %v1372 = vpop.f32.mrb[0].mxu0
      %v1373 = vadd.f32 %v1100, %v1372
      %v1374 = vpop.f32.mrb[0].mxu0
      %v1375 = vpop.f32.mrb[0].mxu0
      %v1376 = vadd.f32 %v1104, %v1375
      %v1377 = vpop.f32.mrb[0].mxu0
      %1378 = vmatprep.mubr.bf16.mxu0 0
      %1379 = vmatmul.mubr.bf16.gmra.mrb[0].mxu0 %v1259
      %v1380 = vpop.f32.mrb[0].mxu0
      %v1381 = vadd.f32 %v1108, %v1380
      %v1382 = vpop.f32.mrb[0].mxu0
      %v1383 = vpop.f32.mrb[0].mxu0
      %v1384 = vadd.f32 %v1112, %v1383
      %v1385 = vpop.f32.mrb[0].mxu0
      %1386 = vmatprep.mubr.bf16.mxu0 0
      %1387 = vmatmul.mubr.bf16.gmra.mrb[0].mxu0 %v1262
      %v1388 = vpop.f32.mrb[0].mxu0
      %v1389 = vadd.f32 %v1116, %v1388
      %v1390 = vpop.f32.mrb[0].mxu0
      %v1391 = vpop.f32.mrb[0].mxu0
      %v1392 = vadd.f32 %v1120, %v1391
      %v1393 = vpop.f32.mrb[0].mxu0
      %1394 = vmatprep.mubr.bf16.mxu0 0
      %1395 = vmatmul.mubr.bf16.gmra.mrb[0].mxu0 %v1265
      %v1396 = vpop.f32.mrb[0].mxu0
      %v1397 = vadd.f32 %v1124, %v1396
      %v1398 = vpop.f32.mrb[0].mxu0
      %v1399 = vpop.f32.mrb[0].mxu0
      %v1400 = vadd.f32 %v1128, %v1399
      %v1401 = vpop.f32.mrb[0].mxu0
      %1402 = vmatprep.mubr.bf16.mxu0 0
      %1403 = vmatmul.mubr.bf16.gmra.mrb[0].mxu0 %v1268
      %v1404 = vpop.f32.mrb[0].mxu0
      %v1405 = vadd.f32 %v1132, %v1404
      %v1406 = vpop.f32.mrb[0].mxu0
      %v1407 = vpop.f32.mrb[0].mxu0
      %v1408 = vadd.f32 %v1136, %v1407
      %v1409 = vpop.f32.mrb[0].mxu0
      %1410 = vmatprep.mubr.bf16.mxu0 0
      %1411 = vmatmul.mubr.bf16.gmra.mrb[0].mxu0 %v1271
      %v1412 = vpop.f32.mrb[0].mxu0
      %v1413 = vadd.f32 %v1140, %v1412
      %v1414 = vpop.f32.mrb[0].mxu0
      %v1415 = vpop.f32.mrb[0].mxu0
      %v1416 = vadd.f32 %v1144, %v1415
      %v1417 = vpop.f32.mrb[0].mxu0
      %1418 = vmatprep.mubr.bf16.mxu0 0
      %1419 = vmatmul.mubr.bf16.gmra.mrb[0].mxu0 %v1274
      %v1420 = vpop.f32.mrb[0].mxu0
      %v1421 = vadd.f32 %v1148, %v1420
      %v1422 = vpop.f32.mrb[0].mxu0
      %v1423 = vpop.f32.mrb[0].mxu0
      %v1424 = vadd.f32 %v1152, %v1423
      %v1425 = vpop.f32.mrb[0].mxu0
      %1426 = vmatprep.mubr.bf16.mxu0 0
      %1427 = vmatmul.mubr.bf16.gmra.mrb[0].mxu0 %v1277
      %v1428 = vpop.f32.mrb[0].mxu0
      %v1429 = vadd.f32 %v1156, %v1428
      %v1430 = vpop.f32.mrb[0].mxu0
      %v1431 = vpop.f32.mrb[0].mxu0
      %v1432 = vadd.f32 %v1160, %v1431
      %v1433 = vpop.f32.mrb[0].mxu0
      %1434 = vmatprep.mubr.bf16.mxu0 0
      %1435 = vmatmul.mubr.bf16.gmra.mrb[0].mxu0 %v1280
      %v1436 = vpop.f32.mrb[0].mxu0
      %v1437 = vadd.f32 %v1164, %v1436
      %v1438 = vpop.f32.mrb[0].mxu0
      %v1439 = vpop.f32.mrb[0].mxu0
      %v1440 = vadd.f32 %v1168, %v1439
      %v1441 = vpop.f32.mrb[0].mxu0
      %1442 = vdwg.mxu0
      %v1443 = vmax.f32 %v1317, 0.0
      %v1444 = vmax.f32 %v1320, 0.0
      %v1445 = vmax.f32 %v1325, 0.0
      %v1446 = vmax.f32 %v1328, 0.0
      %v1447 = vmax.f32 %v1333, 0.0
      %v1448 = vmax.f32 %v1336, 0.0
      %v1449 = vmax.f32 %v1341, 0.0
      %v1450 = vmax.f32 %v1344, 0.0
      %v1451 = vmax.f32 %v1349, 0.0
      %v1452 = vmax.f32 %v1352, 0.0
      %v1453 = vmax.f32 %v1357, 0.0
      %v1454 = vmax.f32 %v1360, 0.0
      %v1455 = vmax.f32 %v1365, 0.0
      %v1456 = vmax.f32 %v1368, 0.0
      %v1457 = vmax.f32 %v1373, 0.0
      %v1458 = vmax.f32 %v1376, 0.0
      %v1459 = vmax.f32 %v1381, 0.0
      %v1460 = vmax.f32 %v1384, 0.0
      %v1461 = vmax.f32 %v1389, 0.0
      %v1462 = vmax.f32 %v1392, 0.0
      %v1463 = vmax.f32 %v1397, 0.0
      %v1464 = vmax.f32 %v1400, 0.0
      %v1465 = vmax.f32 %v1405, 0.0
      %v1466 = vmax.f32 %v1408, 0.0
      %v1467 = vmax.f32 %v1413, 0.0
      %v1468 = vmax.f32 %v1416, 0.0
      %v1469 = vmax.f32 %v1421, 0.0
      %v1470 = vmax.f32 %v1424, 0.0
      %v1471 = vmax.f32 %v1429, 0.0
      %v1472 = vmax.f32 %v1432, 0.0
      %v1473 = vmax.f32 %v1437, 0.0
      %v1474 = vmax.f32 %v1440, 0.0
      %v1475 = vpack.c.bf16 %v1444, %v1443
      %v1476 = vpack.c.bf16 %v1446, %v1445
      %v1477 = vpack.c.bf16 %v1448, %v1447
      %v1478 = vpack.c.bf16 %v1450, %v1449
      %v1479 = vpack.c.bf16 %v1452, %v1451
      %v1480 = vpack.c.bf16 %v1454, %v1453
      %v1481 = vpack.c.bf16 %v1456, %v1455
      %v1482 = vpack.c.bf16 %v1458, %v1457
      %v1483 = vpack.c.bf16 %v1460, %v1459
      %v1484 = vpack.c.bf16 %v1462, %v1461
      %v1485 = vpack.c.bf16 %v1464, %v1463
      %v1486 = vpack.c.bf16 %v1466, %v1465
      %v1487 = vpack.c.bf16 %v1468, %v1467
      %v1488 = vpack.c.bf16 %v1470, %v1469
      %v1489 = vpack.c.bf16 %v1472, %v1471
      %v1490 = vpack.c.bf16 %v1474, %v1473
      %v1491 = vld [vmem:[%s7] sm:$0xf]
      %v1492 = vld [vmem:[%s7 + $0x4] sm:$0xf]
      %v1493 = vld [vmem:[%s7 + $0x8] sm:$0xf]
      %v1494 = vld [vmem:[%s7 + $0xc] sm:$0xf]
      %v1495 = vld [vmem:[%s8] sm:$0x1]
      %v1497 = vlaneseq
      %v1498 = vshrl.u32 %v1497, 7
      %v1499 = vsub.s32 0, %v1498
      %v1500 = vrot.slane %v1495, %v1499
      %v1506 = vunpack.c.l.b16 %v1491
      %v1507 = vunpack.c.l.b16 %v1492
      %v1508 = vunpack.c.l.b16 %v1493
      %v1509 = vunpack.c.l.b16 %v1494
      %v1510 = vpack.c.b16 %v1507, %v1506
      %v1511 = vpack.c.b16 %v1509, %v1508
      %v1515 = vsel %vm1233, %v1475, 0
      %v1518 = vsel %vm1233, %v1476, 0
      %v1521 = vsel %vm1233, %v1477, 0
      %v1524 = vsel %vm1233, %v1478, 0
      %v1527 = vsel %vm1233, %v1479, 0
      %v1530 = vsel %vm1233, %v1480, 0
      %v1533 = vsel %vm1233, %v1481, 0
      %v1536 = vsel %vm1233, %v1482, 0
      %v1539 = vsel %vm1233, %v1483, 0
      %v1542 = vsel %vm1233, %v1484, 0
      %v1545 = vsel %vm1233, %v1485, 0
      %v1548 = vsel %vm1233, %v1486, 0
      %v1551 = vsel %vm1233, %v1487, 0
      %v1554 = vsel %vm1233, %v1488, 0
      %v1557 = vsel %vm1233, %v1489, 0
      %v1560 = vsel %vm1233, %v1490, 0
      %1562 = vmatprep.subr.bf16.mxu0 0
      %1563 = vmatpush1.bf16.msra.mxu0 %v1510
      %1564 = vmatprep.subr.bf16.mxu0 0
      %1565 = vmatpush1.bf16.msra.mxu0 %v1511
      %1566 = vmatprep.subr.bf16.mxu0 0
      %1567 = vmatpush1.bf16.msra.mxu0 0
      %1568 = vmatprep.subr.bf16.mxu0 0
      %1569 = vmatpush1.bf16.msra.mxu0 0
      %1570 = vmatprep.subr.bf16.mxu0 0
      %1571 = vmatpush1.bf16.msra.mxu0 0
      %1572 = vmatprep.subr.bf16.mxu0 0
      %1573 = vmatpush1.bf16.msra.mxu0 0
      %1574 = vmatprep.subr.bf16.mxu0 0
      %1575 = vmatpush1.bf16.msra.mxu0 0
      %1576 = vmatprep.subr.bf16.mxu0 0
      %1577 = vmatpush1.bf16.msra.mxu0 0
      %1578 = vmatprep.subr.bf16.mxu0 0
      %1579 = vmatpush1.bf16.msra.mxu0 0
      %1580 = vmatprep.subr.bf16.mxu0 0
      %1581 = vmatpush1.bf16.msra.mxu0 0
      %1582 = vmatprep.subr.bf16.mxu0 0
      %1583 = vmatpush1.bf16.msra.mxu0 0
      %1584 = vmatprep.subr.bf16.mxu0 0
      %1585 = vmatpush1.bf16.msra.mxu0 0
      %1586 = vmatprep.subr.bf16.mxu0 0
      %1587 = vmatpush1.bf16.msra.mxu0 0
      %1588 = vmatprep.subr.bf16.mxu0 0
      %1589 = vmatpush1.bf16.msra.mxu0 0
      %1590 = vmatprep.subr.bf16.mxu0 0
      %1591 = vmatpush1.bf16.msra.mxu0 0
      %1592 = vmatprep.subr.bf16.mxu0 0
      %1593 = vmatpush1.bf16.msra.mxu0 0
      %1594 = vmatprep.mubr.bf16.mxu0 0
      %1595 = vmatmul.mubr.bf16.gmra.mrb[0].mxu0 %v1515
      %v1596 = vpop.f32.mrb[0].mxu0
      %v1597 = vadd.f32 %v1500, %v1596
      %v1598 = vpop.f32.mrb[0].mxu0
      %v1599 = vpop.f32.mrb[0].mxu0
      %v1600 = vadd.f32 %v1500, %v1599
      %v1601 = vpop.f32.mrb[0].mxu0
      %1602 = vmatprep.mubr.bf16.mxu0 0
      %1603 = vmatmul.mubr.bf16.gmra.mrb[0].mxu0 %v1518
      %v1604 = vpop.f32.mrb[0].mxu0
      %v1605 = vadd.f32 %v1500, %v1604
      %v1606 = vpop.f32.mrb[0].mxu0
      %v1607 = vpop.f32.mrb[0].mxu0
      %v1608 = vadd.f32 %v1500, %v1607
      %v1609 = vpop.f32.mrb[0].mxu0
      %1610 = vmatprep.mubr.bf16.mxu0 0
      %1611 = vmatmul.mubr.bf16.gmra.mrb[0].mxu0 %v1521
      %v1612 = vpop.f32.mrb[0].mxu0
      %v1613 = vadd.f32 %v1500, %v1612
      %v1614 = vpop.f32.mrb[0].mxu0
      %v1615 = vpop.f32.mrb[0].mxu0
      %v1616 = vadd.f32 %v1500, %v1615
      %v1617 = vpop.f32.mrb[0].mxu0
      %1618 = vmatprep.mubr.bf16.mxu0 0
      %1619 = vmatmul.mubr.bf16.gmra.mrb[0].mxu0 %v1524
      %v1620 = vpop.f32.mrb[0].mxu0
      %v1621 = vadd.f32 %v1500, %v1620
      %v1622 = vpop.f32.mrb[0].mxu0
      %v1623 = vpop.f32.mrb[0].mxu0
      %v1624 = vadd.f32 %v1500, %v1623
      %v1625 = vpop.f32.mrb[0].mxu0
      %1626 = vmatprep.mubr.bf16.mxu0 0
      %1627 = vmatmul.mubr.bf16.gmra.mrb[0].mxu0 %v1527
      %v1628 = vpop.f32.mrb[0].mxu0
      %v1629 = vadd.f32 %v1500, %v1628
      %v1630 = vpop.f32.mrb[0].mxu0
      %v1631 = vpop.f32.mrb[0].mxu0
      %v1632 = vadd.f32 %v1500, %v1631
      %v1633 = vpop.f32.mrb[0].mxu0
      %1634 = vmatprep.mubr.bf16.mxu0 0
      %1635 = vmatmul.mubr.bf16.gmra.mrb[0].mxu0 %v1530
      %v1636 = vpop.f32.mrb[0].mxu0
      %v1637 = vadd.f32 %v1500, %v1636
      %v1638 = vpop.f32.mrb[0].mxu0
      %v1639 = vpop.f32.mrb[0].mxu0
      %v1640 = vadd.f32 %v1500, %v1639
      %v1641 = vpop.f32.mrb[0].mxu0
      %1642 = vmatprep.mubr.bf16.mxu0 0
      %1643 = vmatmul.mubr.bf16.gmra.mrb[0].mxu0 %v1533
      %v1644 = vpop.f32.mrb[0].mxu0
      %v1645 = vadd.f32 %v1500, %v1644
      %v1646 = vpop.f32.mrb[0].mxu0
      %v1647 = vpop.f32.mrb[0].mxu0
      %v1648 = vadd.f32 %v1500, %v1647
      %v1649 = vpop.f32.mrb[0].mxu0
      %1650 = vmatprep.mubr.bf16.mxu0 0
      %1651 = vmatmul.mubr.bf16.gmra.mrb[0].mxu0 %v1536
      %v1652 = vpop.f32.mrb[0].mxu0
      %v1653 = vadd.f32 %v1500, %v1652
      %v1654 = vpop.f32.mrb[0].mxu0
      %v1655 = vpop.f32.mrb[0].mxu0
      %v1656 = vadd.f32 %v1500, %v1655
      %v1657 = vpop.f32.mrb[0].mxu0
      %1658 = vmatprep.mubr.bf16.mxu0 0
      %1659 = vmatmul.mubr.bf16.gmra.mrb[0].mxu0 %v1539
      %v1660 = vpop.f32.mrb[0].mxu0
      %v1661 = vadd.f32 %v1500, %v1660
      %v1662 = vpop.f32.mrb[0].mxu0
      %v1663 = vpop.f32.mrb[0].mxu0
      %v1664 = vadd.f32 %v1500, %v1663
      %v1665 = vpop.f32.mrb[0].mxu0
      %1666 = vmatprep.mubr.bf16.mxu0 0
      %1667 = vmatmul.mubr.bf16.gmra.mrb[0].mxu0 %v1542
      %v1668 = vpop.f32.mrb[0].mxu0
      %v1669 = vadd.f32 %v1500, %v1668
      %v1670 = vpop.f32.mrb[0].mxu0
      %v1671 = vpop.f32.mrb[0].mxu0
      %v1672 = vadd.f32 %v1500, %v1671
      %v1673 = vpop.f32.mrb[0].mxu0
      %1674 = vmatprep.mubr.bf16.mxu0 0
      %1675 = vmatmul.mubr.bf16.gmra.mrb[0].mxu0 %v1545
      %v1676 = vpop.f32.mrb[0].mxu0
      %v1677 = vadd.f32 %v1500, %v1676
      %v1678 = vpop.f32.mrb[0].mxu0
      %v1679 = vpop.f32.mrb[0].mxu0
      %v1680 = vadd.f32 %v1500, %v1679
      %v1681 = vpop.f32.mrb[0].mxu0
      %1682 = vmatprep.mubr.bf16.mxu0 0
      %1683 = vmatmul.mubr.bf16.gmra.mrb[0].mxu0 %v1548
      %v1684 = vpop.f32.mrb[0].mxu0
      %v1685 = vadd.f32 %v1500, %v1684
      %v1686 = vpop.f32.mrb[0].mxu0
      %v1687 = vpop.f32.mrb[0].mxu0
      %v1688 = vadd.f32 %v1500, %v1687
      %v1689 = vpop.f32.mrb[0].mxu0
      %1690 = vmatprep.mubr.bf16.mxu0 0
      %1691 = vmatmul.mubr.bf16.gmra.mrb[0].mxu0 %v1551
      %v1692 = vpop.f32.mrb[0].mxu0
      %v1693 = vadd.f32 %v1500, %v1692
      %v1694 = vpop.f32.mrb[0].mxu0
      %v1695 = vpop.f32.mrb[0].mxu0
      %v1696 = vadd.f32 %v1500, %v1695
      %v1697 = vpop.f32.mrb[0].mxu0
      %1698 = vmatprep.mubr.bf16.mxu0 0
      %1699 = vmatmul.mubr.bf16.gmra.mrb[0].mxu0 %v1554
      %v1700 = vpop.f32.mrb[0].mxu0
      %v1701 = vadd.f32 %v1500, %v1700
      %v1702 = vpop.f32.mrb[0].mxu0
      %v1703 = vpop.f32.mrb[0].mxu0
      %v1704 = vadd.f32 %v1500, %v1703
      %v1705 = vpop.f32.mrb[0].mxu0
      %1706 = vmatprep.mubr.bf16.mxu0 0
      %1707 = vmatmul.mubr.bf16.gmra.mrb[0].mxu0 %v1557
      %v1708 = vpop.f32.mrb[0].mxu0
      %v1709 = vadd.f32 %v1500, %v1708
      %v1710 = vpop.f32.mrb[0].mxu0
      %v1711 = vpop.f32.mrb[0].mxu0
      %v1712 = vadd.f32 %v1500, %v1711
      %v1713 = vpop.f32.mrb[0].mxu0
      %1714 = vmatprep.mubr.bf16.mxu0 0
      %1715 = vmatmul.mubr.bf16.gmra.mrb[0].mxu0 %v1560
      %v1716 = vpop.f32.mrb[0].mxu0
      %v1717 = vadd.f32 %v1500, %v1716
      %v1718 = vpop.f32.mrb[0].mxu0
      %v1719 = vpop.f32.mrb[0].mxu0
      %v1720 = vadd.f32 %v1500, %v1719
      %v1721 = vpop.f32.mrb[0].mxu0
      %1722 = vdwg.mxu0
      %v1723 = vmax.f32 %v1597, 0.0
      %v1724 = vmax.f32 %v1600, 0.0
      %v1725 = vmax.f32 %v1605, 0.0
      %v1726 = vmax.f32 %v1608, 0.0
      %v1727 = vmax.f32 %v1613, 0.0
      %v1728 = vmax.f32 %v1616, 0.0
      %v1729 = vmax.f32 %v1621, 0.0
      %v1730 = vmax.f32 %v1624, 0.0
      %v1731 = vmax.f32 %v1629, 0.0
      %v1732 = vmax.f32 %v1632, 0.0
      %v1733 = vmax.f32 %v1637, 0.0
      %v1734 = vmax.f32 %v1640, 0.0
      %v1735 = vmax.f32 %v1645, 0.0
      %v1736 = vmax.f32 %v1648, 0.0
      %v1737 = vmax.f32 %v1653, 0.0
      %v1738 = vmax.f32 %v1656, 0.0
      %v1739 = vmax.f32 %v1661, 0.0
      %v1740 = vmax.f32 %v1664, 0.0
      %v1741 = vmax.f32 %v1669, 0.0
      %v1742 = vmax.f32 %v1672, 0.0
      %v1743 = vmax.f32 %v1677, 0.0
      %v1744 = vmax.f32 %v1680, 0.0
      %v1745 = vmax.f32 %v1685, 0.0
      %v1746 = vmax.f32 %v1688, 0.0
      %v1747 = vmax.f32 %v1693, 0.0
      %v1748 = vmax.f32 %v1696, 0.0
      %v1749 = vmax.f32 %v1701, 0.0
      %v1750 = vmax.f32 %v1704, 0.0
      %v1751 = vmax.f32 %v1709, 0.0
      %v1752 = vmax.f32 %v1712, 0.0
      %v1753 = vmax.f32 %v1717, 0.0
      %v1754 = vmax.f32 %v1720, 0.0
      %v1755 = vld [vmem:[%s423] sm:$0xff]
      %v1756 = vld [vmem:[%s423 + $0x8] sm:$0xff]
      %v1757 = vld [vmem:[%s423 + $0x10] sm:$0xff]
      %v1758 = vld [vmem:[%s423 + $0x18] sm:$0xff]
      %v1763 = vcombine.high %v1755, %v1755
      %v1765 = vunpack.c.l.s4 1966171168
      %v1766 = vunpack.c.0.s8 %v1765
      %v1767 = vlaneseq
      %v1768 = vshrl.u32 %v1767, 7
      %v1769 = vsub.s32 %v1766, %v1768
      %v1770 = vrot.slane %v1755, %v1769
      %v1772 = vunpack.c.l.s4 1966171168
      %v1773 = vunpack.c.0.s8 %v1772
      %v1774 = vlaneseq
      %v1775 = vshrl.u32 %v1774, 7
      %v1776 = vsub.s32 %v1773, %v1775
      %v1777 = vrot.slane %v1763, %v1776
      %v1778 = vcombine.high %v1770, %v1770
      %v1779 = vcombine.high %v1777, %v1777
      %v1781 = vunpack.c.l.s4 1966171168
      %v1782 = vunpack.c.0.s8 %v1781
      %v1783 = vlaneseq
      %v1784 = vshrl.u32 %v1783, 7
      %v1785 = vsub.s32 %v1782, %v1784
      %v1786 = vrot.slane %v1770, %v1785
      %v1788 = vunpack.c.l.s4 1966171168
      %v1789 = vunpack.c.0.s8 %v1788
      %v1790 = vlaneseq
      %v1791 = vshrl.u32 %v1790, 7
      %v1792 = vsub.s32 %v1789, %v1791
      %v1793 = vrot.slane %v1777, %v1792
      %v1795 = vunpack.c.l.s4 1966171168
      %v1796 = vunpack.c.0.s8 %v1795
      %v1797 = vlaneseq
      %v1798 = vshrl.u32 %v1797, 7
      %v1799 = vsub.s32 %v1796, %v1798
      %v1800 = vrot.slane %v1778, %v1799
      %v1802 = vunpack.c.l.s4 1966171168
      %v1803 = vunpack.c.0.s8 %v1802
      %v1804 = vlaneseq
      %v1805 = vshrl.u32 %v1804, 7
      %v1806 = vsub.s32 %v1803, %v1805
      %v1807 = vrot.slane %v1779, %v1806
      %v1808 = vcombine.high %v1786, %v1786
      %v1809 = vcombine.high %v1793, %v1793
      %v1810 = vcombine.high %v1800, %v1800
      %v1811 = vcombine.high %v1807, %v1807
      %v1812 = vcombine.high %v1756, %v1756
      %v1814 = vunpack.c.l.s4 1966171168
      %v1815 = vunpack.c.0.s8 %v1814
      %v1816 = vlaneseq
      %v1817 = vshrl.u32 %v1816, 7
      %v1818 = vsub.s32 %v1815, %v1817
      %v1819 = vrot.slane %v1756, %v1818
      %v1821 = vunpack.c.l.s4 1966171168
      %v1822 = vunpack.c.0.s8 %v1821
      %v1823 = vlaneseq
      %v1824 = vshrl.u32 %v1823, 7
      %v1825 = vsub.s32 %v1822, %v1824
      %v1826 = vrot.slane %v1812, %v1825
      %v1827 = vcombine.high %v1819, %v1819
      %v1828 = vcombine.high %v1826, %v1826
      %v1830 = vunpack.c.l.s4 1966171168
      %v1831 = vunpack.c.0.s8 %v1830
      %v1832 = vlaneseq
      %v1833 = vshrl.u32 %v1832, 7
      %v1834 = vsub.s32 %v1831, %v1833
      %v1835 = vrot.slane %v1819, %v1834
      %v1837 = vunpack.c.l.s4 1966171168
      %v1838 = vunpack.c.0.s8 %v1837
      %v1839 = vlaneseq
      %v1840 = vshrl.u32 %v1839, 7
      %v1841 = vsub.s32 %v1838, %v1840
      %v1842 = vrot.slane %v1826, %v1841
      %v1844 = vunpack.c.l.s4 1966171168
      %v1845 = vunpack.c.0.s8 %v1844
      %v1846 = vlaneseq
      %v1847 = vshrl.u32 %v1846, 7
      %v1848 = vsub.s32 %v1845, %v1847
      %v1849 = vrot.slane %v1827, %v1848
      %v1851 = vunpack.c.l.s4 1966171168
      %v1852 = vunpack.c.0.s8 %v1851
      %v1853 = vlaneseq
      %v1854 = vshrl.u32 %v1853, 7
      %v1855 = vsub.s32 %v1852, %v1854
      %v1856 = vrot.slane %v1828, %v1855
      %v1857 = vcombine.high %v1835, %v1835
      %v1858 = vcombine.high %v1842, %v1842
      %v1859 = vcombine.high %v1849, %v1849
      %v1860 = vcombine.high %v1856, %v1856
      %v1861 = vcombine.high %v1757, %v1757
      %v1863 = vunpack.c.l.s4 1966171168
      %v1864 = vunpack.c.0.s8 %v1863
      %v1865 = vlaneseq
      %v1866 = vshrl.u32 %v1865, 7
      %v1867 = vsub.s32 %v1864, %v1866
      %v1868 = vrot.slane %v1757, %v1867
      %v1870 = vunpack.c.l.s4 1966171168
      %v1871 = vunpack.c.0.s8 %v1870
      %v1872 = vlaneseq
      %v1873 = vshrl.u32 %v1872, 7
      %v1874 = vsub.s32 %v1871, %v1873
      %v1875 = vrot.slane %v1861, %v1874
      %v1876 = vcombine.high %v1868, %v1868
      %v1877 = vcombine.high %v1875, %v1875
      %v1879 = vunpack.c.l.s4 1966171168
      %v1880 = vunpack.c.0.s8 %v1879
      %v1881 = vlaneseq
      %v1882 = vshrl.u32 %v1881, 7
      %v1883 = vsub.s32 %v1880, %v1882
      %v1884 = vrot.slane %v1868, %v1883
      %v1886 = vunpack.c.l.s4 1966171168
      %v1887 = vunpack.c.0.s8 %v1886
      %v1888 = vlaneseq
      %v1889 = vshrl.u32 %v1888, 7
      %v1890 = vsub.s32 %v1887, %v1889
      %v1891 = vrot.slane %v1875, %v1890
      %v1893 = vunpack.c.l.s4 1966171168
      %v1894 = vunpack.c.0.s8 %v1893
      %v1895 = vlaneseq
      %v1896 = vshrl.u32 %v1895, 7
      %v1897 = vsub.s32 %v1894, %v1896
      %v1898 = vrot.slane %v1876, %v1897
      %v1900 = vunpack.c.l.s4 1966171168
      %v1901 = vunpack.c.0.s8 %v1900
      %v1902 = vlaneseq
      %v1903 = vshrl.u32 %v1902, 7
      %v1904 = vsub.s32 %v1901, %v1903
      %v1905 = vrot.slane %v1877, %v1904
      %v1906 = vcombine.high %v1884, %v1884
      %v1907 = vcombine.high %v1891, %v1891
      %v1908 = vcombine.high %v1898, %v1898
      %v1909 = vcombine.high %v1905, %v1905
      %v1910 = vcombine.high %v1758, %v1758
      %v1912 = vunpack.c.l.s4 1966171168
      %v1913 = vunpack.c.0.s8 %v1912
      %v1914 = vlaneseq
      %v1915 = vshrl.u32 %v1914, 7
      %v1916 = vsub.s32 %v1913, %v1915
      %v1917 = vrot.slane %v1758, %v1916
      %v1919 = vunpack.c.l.s4 1966171168
      %v1920 = vunpack.c.0.s8 %v1919
      %v1921 = vlaneseq
      %v1922 = vshrl.u32 %v1921, 7
      %v1923 = vsub.s32 %v1920, %v1922
      %v1924 = vrot.slane %v1910, %v1923
      %v1925 = vcombine.high %v1917, %v1917
      %v1926 = vcombine.high %v1924, %v1924
      %v1928 = vunpack.c.l.s4 1966171168
      %v1929 = vunpack.c.0.s8 %v1928
      %v1930 = vlaneseq
      %v1931 = vshrl.u32 %v1930, 7
      %v1932 = vsub.s32 %v1929, %v1931
      %v1933 = vrot.slane %v1917, %v1932
      %v1935 = vunpack.c.l.s4 1966171168
      %v1936 = vunpack.c.0.s8 %v1935
      %v1937 = vlaneseq
      %v1938 = vshrl.u32 %v1937, 7
      %v1939 = vsub.s32 %v1936, %v1938
      %v1940 = vrot.slane %v1924, %v1939
      %v1942 = vunpack.c.l.s4 1966171168
      %v1943 = vunpack.c.0.s8 %v1942
      %v1944 = vlaneseq
      %v1945 = vshrl.u32 %v1944, 7
      %v1946 = vsub.s32 %v1943, %v1945
      %v1947 = vrot.slane %v1925, %v1946
      %v1949 = vunpack.c.l.s4 1966171168
      %v1950 = vunpack.c.0.s8 %v1949
      %v1951 = vlaneseq
      %v1952 = vshrl.u32 %v1951, 7
      %v1953 = vsub.s32 %v1950, %v1952
      %v1954 = vrot.slane %v1926, %v1953
      %v1955 = vcombine.high %v1933, %v1933
      %v1956 = vcombine.high %v1940, %v1940
      %v1957 = vcombine.high %v1947, %v1947
      %v1958 = vcombine.high %v1954, %v1954
      %v1959 = vlaneseq
      %v1960 = vshrl.u32 %v1959, 7
      %v1961 = vsub.s32 0, %v1960
      %v1962 = vrot.slane %v1786, %v1961
      %v1963 = vlaneseq
      %v1964 = vshrl.u32 %v1963, 7
      %v1965 = vsub.s32 0, %v1964
      %v1966 = vrot.slane %v1800, %v1965
      %v1967 = vlaneseq
      %v1968 = vshrl.u32 %v1967, 7
      %v1969 = vsub.s32 0, %v1968
      %v1970 = vrot.slane %v1808, %v1969
      %v1971 = vlaneseq
      %v1972 = vshrl.u32 %v1971, 7
      %v1973 = vsub.s32 0, %v1972
      %v1974 = vrot.slane %v1810, %v1973
      %v1975 = vlaneseq
      %v1976 = vshrl.u32 %v1975, 7
      %v1977 = vsub.s32 0, %v1976
      %v1978 = vrot.slane %v1793, %v1977
      %v1979 = vlaneseq
      %v1980 = vshrl.u32 %v1979, 7
      %v1981 = vsub.s32 0, %v1980
      %v1982 = vrot.slane %v1807, %v1981
      %v1983 = vlaneseq
      %v1984 = vshrl.u32 %v1983, 7
      %v1985 = vsub.s32 0, %v1984
      %v1986 = vrot.slane %v1809, %v1985
      %v1987 = vlaneseq
      %v1988 = vshrl.u32 %v1987, 7
      %v1989 = vsub.s32 0, %v1988
      %v1990 = vrot.slane %v1811, %v1989
      %v1991 = vlaneseq
      %v1992 = vshrl.u32 %v1991, 7
      %v1993 = vsub.s32 0, %v1992
      %v1994 = vrot.slane %v1835, %v1993
      %v1995 = vlaneseq
      %v1996 = vshrl.u32 %v1995, 7
      %v1997 = vsub.s32 0, %v1996
      %v1998 = vrot.slane %v1849, %v1997
      %v1999 = vlaneseq
      %v2000 = vshrl.u32 %v1999, 7
      %v2001 = vsub.s32 0, %v2000
      %v2002 = vrot.slane %v1857, %v2001
      %v2003 = vlaneseq
      %v2004 = vshrl.u32 %v2003, 7
      %v2005 = vsub.s32 0, %v2004
      %v2006 = vrot.slane %v1859, %v2005
      %v2007 = vlaneseq
      %v2008 = vshrl.u32 %v2007, 7
      %v2009 = vsub.s32 0, %v2008
      %v2010 = vrot.slane %v1842, %v2009
      %v2011 = vlaneseq
      %v2012 = vshrl.u32 %v2011, 7
      %v2013 = vsub.s32 0, %v2012
      %v2014 = vrot.slane %v1856, %v2013
      %v2015 = vlaneseq
      %v2016 = vshrl.u32 %v2015, 7
      %v2017 = vsub.s32 0, %v2016
      %v2018 = vrot.slane %v1858, %v2017
      %v2019 = vlaneseq
      %v2020 = vshrl.u32 %v2019, 7
      %v2021 = vsub.s32 0, %v2020
      %v2022 = vrot.slane %v1860, %v2021
      %v2023 = vlaneseq
      %v2024 = vshrl.u32 %v2023, 7
      %v2025 = vsub.s32 0, %v2024
      %v2026 = vrot.slane %v1884, %v2025
      %v2027 = vlaneseq
      %v2028 = vshrl.u32 %v2027, 7
      %v2029 = vsub.s32 0, %v2028
      %v2030 = vrot.slane %v1898, %v2029
      %v2031 = vlaneseq
      %v2032 = vshrl.u32 %v2031, 7
      %v2033 = vsub.s32 0, %v2032
      %v2034 = vrot.slane %v1906, %v2033
      %v2035 = vlaneseq
      %v2036 = vshrl.u32 %v2035, 7
      %v2037 = vsub.s32 0, %v2036
      %v2038 = vrot.slane %v1908, %v2037
      %v2039 = vlaneseq
      %v2040 = vshrl.u32 %v2039, 7
      %v2041 = vsub.s32 0, %v2040
      %v2042 = vrot.slane %v1891, %v2041
      %v2043 = vlaneseq
      %v2044 = vshrl.u32 %v2043, 7
      %v2045 = vsub.s32 0, %v2044
      %v2046 = vrot.slane %v1905, %v2045
      %v2047 = vlaneseq
      %v2048 = vshrl.u32 %v2047, 7
      %v2049 = vsub.s32 0, %v2048
      %v2050 = vrot.slane %v1907, %v2049
      %v2051 = vlaneseq
      %v2052 = vshrl.u32 %v2051, 7
      %v2053 = vsub.s32 0, %v2052
      %v2054 = vrot.slane %v1909, %v2053
      %v2055 = vlaneseq
      %v2056 = vshrl.u32 %v2055, 7
      %v2057 = vsub.s32 0, %v2056
      %v2058 = vrot.slane %v1933, %v2057
      %v2059 = vlaneseq
      %v2060 = vshrl.u32 %v2059, 7
      %v2061 = vsub.s32 0, %v2060
      %v2062 = vrot.slane %v1947, %v2061
      %v2063 = vlaneseq
      %v2064 = vshrl.u32 %v2063, 7
      %v2065 = vsub.s32 0, %v2064
      %v2066 = vrot.slane %v1955, %v2065
      %v2067 = vlaneseq
      %v2068 = vshrl.u32 %v2067, 7
      %v2069 = vsub.s32 0, %v2068
      %v2070 = vrot.slane %v1957, %v2069
      %v2071 = vlaneseq
      %v2072 = vshrl.u32 %v2071, 7
      %v2073 = vsub.s32 0, %v2072
      %v2074 = vrot.slane %v1940, %v2073
      %v2075 = vlaneseq
      %v2076 = vshrl.u32 %v2075, 7
      %v2077 = vsub.s32 0, %v2076
      %v2078 = vrot.slane %v1954, %v2077
      %v2079 = vlaneseq
      %v2080 = vshrl.u32 %v2079, 7
      %v2081 = vsub.s32 0, %v2080
      %v2082 = vrot.slane %v1956, %v2081
      %v2083 = vlaneseq
      %v2084 = vshrl.u32 %v2083, 7
      %v2085 = vsub.s32 0, %v2084
      %v2086 = vrot.slane %v1958, %v2085
      %v2119 = vmul.f32 %v1723, %v1962
      %v2120 = vmul.f32 %v1724, %v1966
      %v2121 = vmul.f32 %v1725, %v1970
      %v2122 = vmul.f32 %v1726, %v1974
      %v2123 = vmul.f32 %v1727, %v1978
      %v2124 = vmul.f32 %v1728, %v1982
      %v2125 = vmul.f32 %v1729, %v1986
      %v2126 = vmul.f32 %v1730, %v1990
      %v2127 = vmul.f32 %v1731, %v1994
      %v2128 = vmul.f32 %v1732, %v1998
      %v2129 = vmul.f32 %v1733, %v2002
      %v2130 = vmul.f32 %v1734, %v2006
      %v2131 = vmul.f32 %v1735, %v2010
      %v2132 = vmul.f32 %v1736, %v2014
      %v2133 = vmul.f32 %v1737, %v2018
      %v2134 = vmul.f32 %v1738, %v2022
      %v2135 = vmul.f32 %v1739, %v2026
      %v2136 = vmul.f32 %v1740, %v2030
      %v2137 = vmul.f32 %v1741, %v2034
      %v2138 = vmul.f32 %v1742, %v2038
      %v2139 = vmul.f32 %v1743, %v2042
      %v2140 = vmul.f32 %v1744, %v2046
      %v2141 = vmul.f32 %v1745, %v2050
      %v2142 = vmul.f32 %v1746, %v2054
      %v2143 = vmul.f32 %v1747, %v2058
      %v2144 = vmul.f32 %v1748, %v2062
      %v2145 = vmul.f32 %v1749, %v2066
      %v2146 = vmul.f32 %v1750, %v2070
      %v2147 = vmul.f32 %v1751, %v2074
      %v2148 = vmul.f32 %v1752, %v2078
      %v2149 = vmul.f32 %v1753, %v2082
      %v2150 = vmul.f32 %v1754, %v2086
      %v2151 = vsel %vm1233, %v2119, 0.0
      %2152 = vadd.xlane.f32.xlu0 %v2151
      %v2153 = vpop.xlane.xlu0 %2152
      %v2154 = vsel %vm1233, %v2120, 0.0
      %2155 = vadd.xlane.f32.xlu0 %v2154
      %v2156 = vpop.xlane.xlu0 %2155
      %v2157 = vsel %vm1233, %v2121, 0.0
      %2158 = vadd.xlane.f32.xlu0 %v2157
      %v2159 = vpop.xlane.xlu0 %2158
      %v2160 = vsel %vm1233, %v2122, 0.0
      %2161 = vadd.xlane.f32.xlu0 %v2160
      %v2162 = vpop.xlane.xlu0 %2161
      %v2163 = vsel %vm1233, %v2123, 0.0
      %2164 = vadd.xlane.f32.xlu0 %v2163
      %v2165 = vpop.xlane.xlu0 %2164
      %v2166 = vsel %vm1233, %v2124, 0.0
      %2167 = vadd.xlane.f32.xlu0 %v2166
      %v2168 = vpop.xlane.xlu0 %2167
      %v2169 = vsel %vm1233, %v2125, 0.0
      %2170 = vadd.xlane.f32.xlu0 %v2169
      %v2171 = vpop.xlane.xlu0 %2170
      %v2172 = vsel %vm1233, %v2126, 0.0
      %2173 = vadd.xlane.f32.xlu0 %v2172
      %v2174 = vpop.xlane.xlu0 %2173
      %v2175 = vsel %vm1233, %v2127, 0.0
      %2176 = vadd.xlane.f32.xlu0 %v2175
      %v2177 = vpop.xlane.xlu0 %2176
      %v2178 = vsel %vm1233, %v2128, 0.0
      %2179 = vadd.xlane.f32.xlu0 %v2178
      %v2180 = vpop.xlane.xlu0 %2179
      %v2181 = vsel %vm1233, %v2129, 0.0
      %2182 = vadd.xlane.f32.xlu0 %v2181
      %v2183 = vpop.xlane.xlu0 %2182
      %v2184 = vsel %vm1233, %v2130, 0.0
      %2185 = vadd.xlane.f32.xlu0 %v2184
      %v2186 = vpop.xlane.xlu0 %2185
      %v2187 = vsel %vm1233, %v2131, 0.0
      %2188 = vadd.xlane.f32.xlu0 %v2187
      %v2189 = vpop.xlane.xlu0 %2188
      %v2190 = vsel %vm1233, %v2132, 0.0
      %2191 = vadd.xlane.f32.xlu0 %v2190
      %v2192 = vpop.xlane.xlu0 %2191
      %v2193 = vsel %vm1233, %v2133, 0.0
      %2194 = vadd.xlane.f32.xlu0 %v2193
      %v2195 = vpop.xlane.xlu0 %2194
      %v2196 = vsel %vm1233, %v2134, 0.0
      %2197 = vadd.xlane.f32.xlu0 %v2196
      %v2198 = vpop.xlane.xlu0 %2197
      %v2199 = vsel %vm1233, %v2135, 0.0
      %2200 = vadd.xlane.f32.xlu0 %v2199
      %v2201 = vpop.xlane.xlu0 %2200
      %v2202 = vsel %vm1233, %v2136, 0.0
      %2203 = vadd.xlane.f32.xlu0 %v2202
      %v2204 = vpop.xlane.xlu0 %2203
      %v2205 = vsel %vm1233, %v2137, 0.0
      %2206 = vadd.xlane.f32.xlu0 %v2205
      %v2207 = vpop.xlane.xlu0 %2206
      %v2208 = vsel %vm1233, %v2138, 0.0
      %2209 = vadd.xlane.f32.xlu0 %v2208
      %v2210 = vpop.xlane.xlu0 %2209
      %v2211 = vsel %vm1233, %v2139, 0.0
      %2212 = vadd.xlane.f32.xlu0 %v2211
      %v2213 = vpop.xlane.xlu0 %2212
      %v2214 = vsel %vm1233, %v2140, 0.0
      %2215 = vadd.xlane.f32.xlu0 %v2214
      %v2216 = vpop.xlane.xlu0 %2215
      %v2217 = vsel %vm1233, %v2141, 0.0
      %2218 = vadd.xlane.f32.xlu0 %v2217
      %v2219 = vpop.xlane.xlu0 %2218
      %v2220 = vsel %vm1233, %v2142, 0.0
      %2221 = vadd.xlane.f32.xlu0 %v2220
      %v2222 = vpop.xlane.xlu0 %2221
      %v2223 = vsel %vm1233, %v2143, 0.0
      %2224 = vadd.xlane.f32.xlu0 %v2223
      %v2225 = vpop.xlane.xlu0 %2224
      %v2226 = vsel %vm1233, %v2144, 0.0
      %2227 = vadd.xlane.f32.xlu0 %v2226
      %v2228 = vpop.xlane.xlu0 %2227
      %v2229 = vsel %vm1233, %v2145, 0.0
      %2230 = vadd.xlane.f32.xlu0 %v2229
      %v2231 = vpop.xlane.xlu0 %2230
      %v2232 = vsel %vm1233, %v2146, 0.0
      %2233 = vadd.xlane.f32.xlu0 %v2232
      %v2234 = vpop.xlane.xlu0 %2233
      %v2235 = vsel %vm1233, %v2147, 0.0
      %2236 = vadd.xlane.f32.xlu0 %v2235
      %v2237 = vpop.xlane.xlu0 %2236
      %v2238 = vsel %vm1233, %v2148, 0.0
      %2239 = vadd.xlane.f32.xlu0 %v2238
      %v2240 = vpop.xlane.xlu0 %2239
      %v2241 = vsel %vm1233, %v2149, 0.0
      %2242 = vadd.xlane.f32.xlu0 %v2241
      %v2243 = vpop.xlane.xlu0 %2242
      %v2244 = vsel %vm1233, %v2150, 0.0
      %2245 = vadd.xlane.f32.xlu0 %v2244
      %v2246 = vpop.xlane.xlu0 %2245
      %v2247 = vlaneseq
      %v2248 = vand.u32 %v2247, 127
      %v2249 = vld [vmem:[%s429] sm:$0xff]
      %v2250 = vld [vmem:[%s429 + $0x8] sm:$0xff]
      %v2251 = vld [vmem:[%s429 + $0x10] sm:$0xff]
      %v2252 = vld [vmem:[%s429 + $0x18] sm:$0xff]
      %2253 = vset.pattern.permute.xlu0 0
      %2254 = vperm.xlu0 %2253, %v2249
      %v2255 = vpop.permute.xlu0 %2254
      %2256 = vset.pattern.permute.xlu0 0
      %2257 = vperm.xlu0 %2256, %v2250
      %v2258 = vpop.permute.xlu0 %2257
      %2259 = vset.pattern.permute.xlu0 0
      %2260 = vperm.xlu0 %2259, %v2251
      %v2261 = vpop.permute.xlu0 %2260
      %2262 = vset.pattern.permute.xlu0 0
      %2263 = vperm.xlu0 %2262, %v2252
      %v2264 = vpop.permute.xlu0 %2263
      %vm2265 = vcmp.lt.s32.totalorder %v2248, %v2255
      %vm2266 = vcmp.lt.s32.totalorder %v2248, %v2258
      %vm2267 = vcmp.lt.s32.totalorder %v2248, %v2261
      %vm2268 = vcmp.lt.s32.totalorder %v2248, %v2264
      %v2301 = vlaneseq
      %v2302 = vshrl.u32 %v2301, 7
      %v2303 = vsub.s32 %v2248, %v2302
      %v2304 = vrot.slane %v2153, %v2303
      %v2305 = vlaneseq
      %v2306 = vshrl.u32 %v2305, 7
      %v2307 = vsub.s32 %v2248, %v2306
      %v2308 = vrot.slane %v2156, %v2307
      %v2309 = vlaneseq
      %v2310 = vshrl.u32 %v2309, 7
      %v2311 = vsub.s32 %v2248, %v2310
      %v2312 = vrot.slane %v2159, %v2311
      %v2313 = vlaneseq
      %v2314 = vshrl.u32 %v2313, 7
      %v2315 = vsub.s32 %v2248, %v2314
      %v2316 = vrot.slane %v2162, %v2315
      %v2317 = vlaneseq
      %v2318 = vshrl.u32 %v2317, 7
      %v2319 = vsub.s32 %v2248, %v2318
      %v2320 = vrot.slane %v2165, %v2319
      %v2321 = vlaneseq
      %v2322 = vshrl.u32 %v2321, 7
      %v2323 = vsub.s32 %v2248, %v2322
      %v2324 = vrot.slane %v2168, %v2323
      %v2325 = vlaneseq
      %v2326 = vshrl.u32 %v2325, 7
      %v2327 = vsub.s32 %v2248, %v2326
      %v2328 = vrot.slane %v2171, %v2327
      %v2329 = vlaneseq
      %v2330 = vshrl.u32 %v2329, 7
      %v2331 = vsub.s32 %v2248, %v2330
      %v2332 = vrot.slane %v2174, %v2331
      %v2333 = vlaneseq
      %v2334 = vshrl.u32 %v2333, 7
      %v2335 = vsub.s32 %v2248, %v2334
      %v2336 = vrot.slane %v2177, %v2335
      %v2337 = vlaneseq
      %v2338 = vshrl.u32 %v2337, 7
      %v2339 = vsub.s32 %v2248, %v2338
      %v2340 = vrot.slane %v2180, %v2339
      %v2341 = vlaneseq
      %v2342 = vshrl.u32 %v2341, 7
      %v2343 = vsub.s32 %v2248, %v2342
      %v2344 = vrot.slane %v2183, %v2343
      %v2345 = vlaneseq
      %v2346 = vshrl.u32 %v2345, 7
      %v2347 = vsub.s32 %v2248, %v2346
      %v2348 = vrot.slane %v2186, %v2347
      %v2349 = vlaneseq
      %v2350 = vshrl.u32 %v2349, 7
      %v2351 = vsub.s32 %v2248, %v2350
      %v2352 = vrot.slane %v2189, %v2351
      %v2353 = vlaneseq
      %v2354 = vshrl.u32 %v2353, 7
      %v2355 = vsub.s32 %v2248, %v2354
      %v2356 = vrot.slane %v2192, %v2355
      %v2357 = vlaneseq
      %v2358 = vshrl.u32 %v2357, 7
      %v2359 = vsub.s32 %v2248, %v2358
      %v2360 = vrot.slane %v2195, %v2359
      %v2361 = vlaneseq
      %v2362 = vshrl.u32 %v2361, 7
      %v2363 = vsub.s32 %v2248, %v2362
      %v2364 = vrot.slane %v2198, %v2363
      %v2365 = vlaneseq
      %v2366 = vshrl.u32 %v2365, 7
      %v2367 = vsub.s32 %v2248, %v2366
      %v2368 = vrot.slane %v2201, %v2367
      %v2369 = vlaneseq
      %v2370 = vshrl.u32 %v2369, 7
      %v2371 = vsub.s32 %v2248, %v2370
      %v2372 = vrot.slane %v2204, %v2371
      %v2373 = vlaneseq
      %v2374 = vshrl.u32 %v2373, 7
      %v2375 = vsub.s32 %v2248, %v2374
      %v2376 = vrot.slane %v2207, %v2375
      %v2377 = vlaneseq
      %v2378 = vshrl.u32 %v2377, 7
      %v2379 = vsub.s32 %v2248, %v2378
      %v2380 = vrot.slane %v2210, %v2379
      %v2381 = vlaneseq
      %v2382 = vshrl.u32 %v2381, 7
      %v2383 = vsub.s32 %v2248, %v2382
      %v2384 = vrot.slane %v2213, %v2383
      %v2385 = vlaneseq
      %v2386 = vshrl.u32 %v2385, 7
      %v2387 = vsub.s32 %v2248, %v2386
      %v2388 = vrot.slane %v2216, %v2387
      %v2389 = vlaneseq
      %v2390 = vshrl.u32 %v2389, 7
      %v2391 = vsub.s32 %v2248, %v2390
      %v2392 = vrot.slane %v2219, %v2391
      %v2393 = vlaneseq
      %v2394 = vshrl.u32 %v2393, 7
      %v2395 = vsub.s32 %v2248, %v2394
      %v2396 = vrot.slane %v2222, %v2395
      %v2397 = vlaneseq
      %v2398 = vshrl.u32 %v2397, 7
      %v2399 = vsub.s32 %v2248, %v2398
      %v2400 = vrot.slane %v2225, %v2399
      %v2401 = vlaneseq
      %v2402 = vshrl.u32 %v2401, 7
      %v2403 = vsub.s32 %v2248, %v2402
      %v2404 = vrot.slane %v2228, %v2403
      %v2405 = vlaneseq
      %v2406 = vshrl.u32 %v2405, 7
      %v2407 = vsub.s32 %v2248, %v2406
      %v2408 = vrot.slane %v2231, %v2407
      %v2409 = vlaneseq
      %v2410 = vshrl.u32 %v2409, 7
      %v2411 = vsub.s32 %v2248, %v2410
      %v2412 = vrot.slane %v2234, %v2411
      %v2413 = vlaneseq
      %v2414 = vshrl.u32 %v2413, 7
      %v2415 = vsub.s32 %v2248, %v2414
      %v2416 = vrot.slane %v2237, %v2415
      %v2417 = vlaneseq
      %v2418 = vshrl.u32 %v2417, 7
      %v2419 = vsub.s32 %v2248, %v2418
      %v2420 = vrot.slane %v2240, %v2419
      %v2421 = vlaneseq
      %v2422 = vshrl.u32 %v2421, 7
      %v2423 = vsub.s32 %v2248, %v2422
      %v2424 = vrot.slane %v2243, %v2423
      %v2425 = vlaneseq
      %v2426 = vshrl.u32 %v2425, 7
      %v2427 = vsub.s32 %v2248, %v2426
      %v2428 = vrot.slane %v2246, %v2427
      %vm2429 = vcmask 1041409
      %v2430 = vsel %vm2429, %v2308, %v2304
      %vm2431 = vcmask 1042434
      %v2432 = vsel %vm2431, %v2312, %v2430
      %vm2433 = vcmask 1043459
      %v2434 = vsel %vm2433, %v2316, %v2432
      %vm2435 = vcmask 1044484
      %v2436 = vsel %vm2435, %v2320, %v2434
      %vm2437 = vcmask 1045509
      %v2438 = vsel %vm2437, %v2324, %v2436
      %vm2439 = vcmask 1046534
      %v2440 = vsel %vm2439, %v2328, %v2438
      %vm2441 = vcmask 1047559
      %v2442 = vsel %vm2441, %v2332, %v2440
      %v2443 = vsel %vm2429, %v2340, %v2336
      %v2444 = vsel %vm2431, %v2344, %v2443
      %v2445 = vsel %vm2433, %v2348, %v2444
      %v2446 = vsel %vm2435, %v2352, %v2445
      %v2447 = vsel %vm2437, %v2356, %v2446
      %v2448 = vsel %vm2439, %v2360, %v2447
      %v2449 = vsel %vm2441, %v2364, %v2448
      %v2450 = vsel %vm2429, %v2372, %v2368
      %v2451 = vsel %vm2431, %v2376, %v2450
      %v2452 = vsel %vm2433, %v2380, %v2451
      %v2453 = vsel %vm2435, %v2384, %v2452
      %v2454 = vsel %vm2437, %v2388, %v2453
      %v2455 = vsel %vm2439, %v2392, %v2454
      %v2456 = vsel %vm2441, %v2396, %v2455
      %v2457 = vsel %vm2429, %v2404, %v2400
      %v2458 = vsel %vm2431, %v2408, %v2457
      %v2459 = vsel %vm2433, %v2412, %v2458
      %v2460 = vsel %vm2435, %v2416, %v2459
      %v2461 = vsel %vm2437, %v2420, %v2460
      %v2462 = vsel %vm2439, %v2424, %v2461
      %v2463 = vsel %vm2441, %v2428, %v2462
      %v2468 = vsel %vm2265, %v2442, -1e+30
      %v2469 = vsel %vm2266, %v2449, -1e+30
      %v2470 = vsel %vm2267, %v2456, -1e+30
      %v2471 = vsel %vm2268, %v2463, -1e+30
      %vm2472 = vcmask 64512
      %v2473 = vsel %vm2472, %v2468, -inf
      %2474 = vmax.xlane.f32.xlu0 %v2473
      %v2475 = vpop.xlane.xlu0 %2474
      %v2476 = vsel %vm2472, %v2469, -inf
      %2477 = vmax.xlane.f32.xlu0 %v2476
      %v2478 = vpop.xlane.xlu0 %2477
      %v2479 = vsel %vm2472, %v2470, -inf
      %2480 = vmax.xlane.f32.xlu0 %v2479
      %v2481 = vpop.xlane.xlu0 %2480
      %v2482 = vsel %vm2472, %v2471, -inf
      %2483 = vmax.xlane.f32.xlu0 %v2482
      %v2484 = vpop.xlane.xlu0 %2483
      %v2485 = vsub.f32 %v2468, %v2475
      %v2486 = vsub.f32 %v2469, %v2478
      %v2487 = vsub.f32 %v2470, %v2481
      %v2488 = vsub.f32 %v2471, %v2484
      %v2489 = vmul.f32 %v2485, 1.442695
      %v2490 = vpow.pop %v2489
      %v2491 = vmul.f32 %v2486, 1.442695
      %v2492 = vpow.pop %v2491
      %v2493 = vmul.f32 %v2487, 1.442695
      %v2494 = vpow.pop %v2493
      %v2495 = vmul.f32 %v2488, 1.442695
      %v2496 = vpow.pop %v2495
      %v2497 = vsel %vm2472, %v2490, 0.0
      %2498 = vadd.xlane.f32.xlu0 %v2497
      %v2499 = vpop.xlane.xlu0 %2498
      %v2500 = vsel %vm2472, %v2492, 0.0
      %2501 = vadd.xlane.f32.xlu0 %v2500
      %v2502 = vpop.xlane.xlu0 %2501
      %v2503 = vsel %vm2472, %v2494, 0.0
      %2504 = vadd.xlane.f32.xlu0 %v2503
      %v2505 = vpop.xlane.xlu0 %2504
      %v2506 = vsel %vm2472, %v2496, 0.0
      %2507 = vadd.xlane.f32.xlu0 %v2506
      %v2508 = vpop.xlane.xlu0 %2507
      %v2509 = vrcp.pop %v2499
      %v2510 = vrcp.pop %v2502
      %v2511 = vrcp.pop %v2505
      %v2512 = vrcp.pop %v2508
      %v2513 = vmul.f32 %v2490, %v2509
      %v2514 = vmul.f32 %v2492, %v2510
      %v2515 = vmul.f32 %v2494, %v2511
      %v2516 = vmul.f32 %v2496, %v2512
      %v2517 = vlaneseq
      %v2518 = vshrl.u32 %v2517, 7
      %v2519 = vsub.s32 0, %v2518
      %v2520 = vrot.slane %v2513, %v2519
      %2522 = vbcast.lane.b32.xlu0 %v2520, 256
      %v2523 = vpop.permute.xlu0 %2522
      %v2524 = vlaneseq
      %v2525 = vshrl.u32 %v2524, 7
      %v2526 = vsub.s32 1, %v2525
      %v2527 = vrot.slane %v2513, %v2526
      %2529 = vbcast.lane.b32.xlu0 %v2527, 256
      %v2530 = vpop.permute.xlu0 %2529
      %v2531 = vlaneseq
      %v2532 = vshrl.u32 %v2531, 7
      %v2533 = vsub.s32 2, %v2532
      %v2534 = vrot.slane %v2513, %v2533
      %2536 = vbcast.lane.b32.xlu0 %v2534, 256
      %v2537 = vpop.permute.xlu0 %2536
      %v2538 = vlaneseq
      %v2539 = vshrl.u32 %v2538, 7
      %v2540 = vsub.s32 3, %v2539
      %v2541 = vrot.slane %v2513, %v2540
      %2543 = vbcast.lane.b32.xlu0 %v2541, 256
      %v2544 = vpop.permute.xlu0 %2543
      %v2545 = vlaneseq
      %v2546 = vshrl.u32 %v2545, 7
      %v2547 = vsub.s32 4, %v2546
      %v2548 = vrot.slane %v2513, %v2547
      %2550 = vbcast.lane.b32.xlu0 %v2548, 256
      %v2551 = vpop.permute.xlu0 %2550
      %v2552 = vlaneseq
      %v2553 = vshrl.u32 %v2552, 7
      %v2554 = vsub.s32 5, %v2553
      %v2555 = vrot.slane %v2513, %v2554
      %2557 = vbcast.lane.b32.xlu0 %v2555, 256
      %v2558 = vpop.permute.xlu0 %2557
      %v2559 = vlaneseq
      %v2560 = vshrl.u32 %v2559, 7
      %v2561 = vsub.s32 6, %v2560
      %v2562 = vrot.slane %v2513, %v2561
      %2564 = vbcast.lane.b32.xlu0 %v2562, 256
      %v2565 = vpop.permute.xlu0 %2564
      %v2566 = vlaneseq
      %v2567 = vshrl.u32 %v2566, 7
      %v2568 = vsub.s32 7, %v2567
      %v2569 = vrot.slane %v2513, %v2568
      %2571 = vbcast.lane.b32.xlu0 %v2569, 256
      %v2572 = vpop.permute.xlu0 %2571
      %v2573 = vlaneseq
      %v2574 = vshrl.u32 %v2573, 7
      %v2575 = vsub.s32 0, %v2574
      %v2576 = vrot.slane %v2514, %v2575
      %2578 = vbcast.lane.b32.xlu0 %v2576, 256
      %v2579 = vpop.permute.xlu0 %2578
      %v2580 = vlaneseq
      %v2581 = vshrl.u32 %v2580, 7
      %v2582 = vsub.s32 1, %v2581
      %v2583 = vrot.slane %v2514, %v2582
      %2585 = vbcast.lane.b32.xlu0 %v2583, 256
      %v2586 = vpop.permute.xlu0 %2585
      %v2587 = vlaneseq
      %v2588 = vshrl.u32 %v2587, 7
      %v2589 = vsub.s32 2, %v2588
      %v2590 = vrot.slane %v2514, %v2589
      %2592 = vbcast.lane.b32.xlu0 %v2590, 256
      %v2593 = vpop.permute.xlu0 %2592
      %v2594 = vlaneseq
      %v2595 = vshrl.u32 %v2594, 7
      %v2596 = vsub.s32 3, %v2595
      %v2597 = vrot.slane %v2514, %v2596
      %2599 = vbcast.lane.b32.xlu0 %v2597, 256
      %v2600 = vpop.permute.xlu0 %2599
      %v2601 = vlaneseq
      %v2602 = vshrl.u32 %v2601, 7
      %v2603 = vsub.s32 4, %v2602
      %v2604 = vrot.slane %v2514, %v2603
      %2606 = vbcast.lane.b32.xlu0 %v2604, 256
      %v2607 = vpop.permute.xlu0 %2606
      %v2608 = vlaneseq
      %v2609 = vshrl.u32 %v2608, 7
      %v2610 = vsub.s32 5, %v2609
      %v2611 = vrot.slane %v2514, %v2610
      %2613 = vbcast.lane.b32.xlu0 %v2611, 256
      %v2614 = vpop.permute.xlu0 %2613
      %v2615 = vlaneseq
      %v2616 = vshrl.u32 %v2615, 7
      %v2617 = vsub.s32 6, %v2616
      %v2618 = vrot.slane %v2514, %v2617
      %2620 = vbcast.lane.b32.xlu0 %v2618, 256
      %v2621 = vpop.permute.xlu0 %2620
      %v2622 = vlaneseq
      %v2623 = vshrl.u32 %v2622, 7
      %v2624 = vsub.s32 7, %v2623
      %v2625 = vrot.slane %v2514, %v2624
      %2627 = vbcast.lane.b32.xlu0 %v2625, 256
      %v2628 = vpop.permute.xlu0 %2627
      %v2629 = vlaneseq
      %v2630 = vshrl.u32 %v2629, 7
      %v2631 = vsub.s32 0, %v2630
      %v2632 = vrot.slane %v2515, %v2631
      %2634 = vbcast.lane.b32.xlu0 %v2632, 256
      %v2635 = vpop.permute.xlu0 %2634
      %v2636 = vlaneseq
      %v2637 = vshrl.u32 %v2636, 7
      %v2638 = vsub.s32 1, %v2637
      %v2639 = vrot.slane %v2515, %v2638
      %2641 = vbcast.lane.b32.xlu0 %v2639, 256
      %v2642 = vpop.permute.xlu0 %2641
      %v2643 = vlaneseq
      %v2644 = vshrl.u32 %v2643, 7
      %v2645 = vsub.s32 2, %v2644
      %v2646 = vrot.slane %v2515, %v2645
      %2648 = vbcast.lane.b32.xlu0 %v2646, 256
      %v2649 = vpop.permute.xlu0 %2648
      %v2650 = vlaneseq
      %v2651 = vshrl.u32 %v2650, 7
      %v2652 = vsub.s32 3, %v2651
      %v2653 = vrot.slane %v2515, %v2652
      %2655 = vbcast.lane.b32.xlu0 %v2653, 256
      %v2656 = vpop.permute.xlu0 %2655
      %v2657 = vlaneseq
      %v2658 = vshrl.u32 %v2657, 7
      %v2659 = vsub.s32 4, %v2658
      %v2660 = vrot.slane %v2515, %v2659
      %2662 = vbcast.lane.b32.xlu0 %v2660, 256
      %v2663 = vpop.permute.xlu0 %2662
      %v2664 = vlaneseq
      %v2665 = vshrl.u32 %v2664, 7
      %v2666 = vsub.s32 5, %v2665
      %v2667 = vrot.slane %v2515, %v2666
      %2669 = vbcast.lane.b32.xlu0 %v2667, 256
      %v2670 = vpop.permute.xlu0 %2669
      %v2671 = vlaneseq
      %v2672 = vshrl.u32 %v2671, 7
      %v2673 = vsub.s32 6, %v2672
      %v2674 = vrot.slane %v2515, %v2673
      %2676 = vbcast.lane.b32.xlu0 %v2674, 256
      %v2677 = vpop.permute.xlu0 %2676
      %v2678 = vlaneseq
      %v2679 = vshrl.u32 %v2678, 7
      %v2680 = vsub.s32 7, %v2679
      %v2681 = vrot.slane %v2515, %v2680
      %2683 = vbcast.lane.b32.xlu0 %v2681, 256
      %v2684 = vpop.permute.xlu0 %2683
      %v2685 = vlaneseq
      %v2686 = vshrl.u32 %v2685, 7
      %v2687 = vsub.s32 0, %v2686
      %v2688 = vrot.slane %v2516, %v2687
      %2690 = vbcast.lane.b32.xlu0 %v2688, 256
      %v2691 = vpop.permute.xlu0 %2690
      %v2692 = vlaneseq
      %v2693 = vshrl.u32 %v2692, 7
      %v2694 = vsub.s32 1, %v2693
      %v2695 = vrot.slane %v2516, %v2694
      %2697 = vbcast.lane.b32.xlu0 %v2695, 256
      %v2698 = vpop.permute.xlu0 %2697
      %v2699 = vlaneseq
      %v2700 = vshrl.u32 %v2699, 7
      %v2701 = vsub.s32 2, %v2700
      %v2702 = vrot.slane %v2516, %v2701
      %2704 = vbcast.lane.b32.xlu0 %v2702, 256
      %v2705 = vpop.permute.xlu0 %2704
      %v2706 = vlaneseq
      %v2707 = vshrl.u32 %v2706, 7
      %v2708 = vsub.s32 3, %v2707
      %v2709 = vrot.slane %v2516, %v2708
      %2711 = vbcast.lane.b32.xlu0 %v2709, 256
      %v2712 = vpop.permute.xlu0 %2711
      %v2713 = vlaneseq
      %v2714 = vshrl.u32 %v2713, 7
      %v2715 = vsub.s32 4, %v2714
      %v2716 = vrot.slane %v2516, %v2715
      %2718 = vbcast.lane.b32.xlu0 %v2716, 256
      %v2719 = vpop.permute.xlu0 %2718
      %v2720 = vlaneseq
      %v2721 = vshrl.u32 %v2720, 7
      %v2722 = vsub.s32 5, %v2721
      %v2723 = vrot.slane %v2516, %v2722
      %2725 = vbcast.lane.b32.xlu0 %v2723, 256
      %v2726 = vpop.permute.xlu0 %2725
      %v2727 = vlaneseq
      %v2728 = vshrl.u32 %v2727, 7
      %v2729 = vsub.s32 6, %v2728
      %v2730 = vrot.slane %v2516, %v2729
      %2732 = vbcast.lane.b32.xlu0 %v2730, 256
      %v2733 = vpop.permute.xlu0 %2732
      %v2734 = vlaneseq
      %v2735 = vshrl.u32 %v2734, 7
      %v2736 = vsub.s32 7, %v2735
      %v2737 = vrot.slane %v2516, %v2736
      %2739 = vbcast.lane.b32.xlu0 %v2737, 256
      %v2740 = vpop.permute.xlu0 %2739
      %v2741 = vmul.f32 %v1723, %v2523
      %v2742 = vmul.f32 %v1724, %v2530
      %v2743 = vmul.f32 %v1725, %v2537
      %v2744 = vmul.f32 %v1726, %v2544
      %v2745 = vmul.f32 %v1727, %v2551
      %v2746 = vmul.f32 %v1728, %v2558
      %v2747 = vmul.f32 %v1729, %v2565
      %v2748 = vmul.f32 %v1730, %v2572
      %v2749 = vmul.f32 %v1731, %v2579
      %v2750 = vmul.f32 %v1732, %v2586
      %v2751 = vmul.f32 %v1733, %v2593
      %v2752 = vmul.f32 %v1734, %v2600
      %v2753 = vmul.f32 %v1735, %v2607
      %v2754 = vmul.f32 %v1736, %v2614
      %v2755 = vmul.f32 %v1737, %v2621
      %v2756 = vmul.f32 %v1738, %v2628
      %v2757 = vmul.f32 %v1739, %v2635
      %v2758 = vmul.f32 %v1740, %v2642
      %v2759 = vmul.f32 %v1741, %v2649
      %v2760 = vmul.f32 %v1742, %v2656
      %v2761 = vmul.f32 %v1743, %v2663
      %v2762 = vmul.f32 %v1744, %v2670
      %v2763 = vmul.f32 %v1745, %v2677
      %v2764 = vmul.f32 %v1746, %v2684
      %v2765 = vmul.f32 %v1747, %v2691
      %v2766 = vmul.f32 %v1748, %v2698
      %v2767 = vmul.f32 %v1749, %v2705
      %v2768 = vmul.f32 %v1750, %v2712
      %v2769 = vmul.f32 %v1751, %v2719
      %v2770 = vmul.f32 %v1752, %v2726
      %v2771 = vmul.f32 %v1753, %v2733
      %v2772 = vmul.f32 %v1754, %v2740
      %v2773 = vsel %vm1233, %v2741, 0.0
      %v2774 = vrot.slane %v2773, 4
      %v2775 = vadd.f32 %v2773, %v2774
      %v2776 = vrot.slane %v2775, 2
      %v2777 = vadd.f32 %v2775, %v2776
      %v2778 = vrot.slane %v2777, 1
      %v2779 = vadd.f32 %v2777, %v2778
      %v2780 = vsel %vm1233, %v2742, 0.0
      %v2781 = vrot.slane %v2780, 4
      %v2782 = vadd.f32 %v2780, %v2781
      %v2783 = vrot.slane %v2782, 2
      %v2784 = vadd.f32 %v2782, %v2783
      %v2785 = vrot.slane %v2784, 1
      %v2786 = vadd.f32 %v2784, %v2785
      %v2787 = vsel %vm1233, %v2743, 0.0
      %v2788 = vrot.slane %v2787, 4
      %v2789 = vadd.f32 %v2787, %v2788
      %v2790 = vrot.slane %v2789, 2
      %v2791 = vadd.f32 %v2789, %v2790
      %v2792 = vrot.slane %v2791, 1
      %v2793 = vadd.f32 %v2791, %v2792
      %v2794 = vsel %vm1233, %v2744, 0.0
      %v2795 = vrot.slane %v2794, 4
      %v2796 = vadd.f32 %v2794, %v2795
      %v2797 = vrot.slane %v2796, 2
      %v2798 = vadd.f32 %v2796, %v2797
      %v2799 = vrot.slane %v2798, 1
      %v2800 = vadd.f32 %v2798, %v2799
      %v2801 = vsel %vm1233, %v2745, 0.0
      %v2802 = vrot.slane %v2801, 4
      %v2803 = vadd.f32 %v2801, %v2802
      %v2804 = vrot.slane %v2803, 2
      %v2805 = vadd.f32 %v2803, %v2804
      %v2806 = vrot.slane %v2805, 1
      %v2807 = vadd.f32 %v2805, %v2806
      %v2808 = vsel %vm1233, %v2746, 0.0
      %v2809 = vrot.slane %v2808, 4
      %v2810 = vadd.f32 %v2808, %v2809
      %v2811 = vrot.slane %v2810, 2
      %v2812 = vadd.f32 %v2810, %v2811
      %v2813 = vrot.slane %v2812, 1
      %v2814 = vadd.f32 %v2812, %v2813
      %v2815 = vsel %vm1233, %v2747, 0.0
      %v2816 = vrot.slane %v2815, 4
      %v2817 = vadd.f32 %v2815, %v2816
      %v2818 = vrot.slane %v2817, 2
      %v2819 = vadd.f32 %v2817, %v2818
      %v2820 = vrot.slane %v2819, 1
      %v2821 = vadd.f32 %v2819, %v2820
      %v2822 = vsel %vm1233, %v2748, 0.0
      %v2823 = vrot.slane %v2822, 4
      %v2824 = vadd.f32 %v2822, %v2823
      %v2825 = vrot.slane %v2824, 2
      %v2826 = vadd.f32 %v2824, %v2825
      %v2827 = vrot.slane %v2826, 1
      %v2828 = vadd.f32 %v2826, %v2827
      %v2829 = vsel %vm1233, %v2749, 0.0
      %v2830 = vrot.slane %v2829, 4
      %v2831 = vadd.f32 %v2829, %v2830
      %v2832 = vrot.slane %v2831, 2
      %v2833 = vadd.f32 %v2831, %v2832
      %v2834 = vrot.slane %v2833, 1
      %v2835 = vadd.f32 %v2833, %v2834
      %v2836 = vsel %vm1233, %v2750, 0.0
      %v2837 = vrot.slane %v2836, 4
      %v2838 = vadd.f32 %v2836, %v2837
      %v2839 = vrot.slane %v2838, 2
      %v2840 = vadd.f32 %v2838, %v2839
      %v2841 = vrot.slane %v2840, 1
      %v2842 = vadd.f32 %v2840, %v2841
      %v2843 = vsel %vm1233, %v2751, 0.0
      %v2844 = vrot.slane %v2843, 4
      %v2845 = vadd.f32 %v2843, %v2844
      %v2846 = vrot.slane %v2845, 2
      %v2847 = vadd.f32 %v2845, %v2846
      %v2848 = vrot.slane %v2847, 1
      %v2849 = vadd.f32 %v2847, %v2848
      %v2850 = vsel %vm1233, %v2752, 0.0
      %v2851 = vrot.slane %v2850, 4
      %v2852 = vadd.f32 %v2850, %v2851
      %v2853 = vrot.slane %v2852, 2
      %v2854 = vadd.f32 %v2852, %v2853
      %v2855 = vrot.slane %v2854, 1
      %v2856 = vadd.f32 %v2854, %v2855
      %v2857 = vsel %vm1233, %v2753, 0.0
      %v2858 = vrot.slane %v2857, 4
      %v2859 = vadd.f32 %v2857, %v2858
      %v2860 = vrot.slane %v2859, 2
      %v2861 = vadd.f32 %v2859, %v2860
      %v2862 = vrot.slane %v2861, 1
      %v2863 = vadd.f32 %v2861, %v2862
      %v2864 = vsel %vm1233, %v2754, 0.0
      %v2865 = vrot.slane %v2864, 4
      %v2866 = vadd.f32 %v2864, %v2865
      %v2867 = vrot.slane %v2866, 2
      %v2868 = vadd.f32 %v2866, %v2867
      %v2869 = vrot.slane %v2868, 1
      %v2870 = vadd.f32 %v2868, %v2869
      %v2871 = vsel %vm1233, %v2755, 0.0
      %v2872 = vrot.slane %v2871, 4
      %v2873 = vadd.f32 %v2871, %v2872
      %v2874 = vrot.slane %v2873, 2
      %v2875 = vadd.f32 %v2873, %v2874
      %v2876 = vrot.slane %v2875, 1
      %v2877 = vadd.f32 %v2875, %v2876
      %v2878 = vsel %vm1233, %v2756, 0.0
      %v2879 = vrot.slane %v2878, 4
      %v2880 = vadd.f32 %v2878, %v2879
      %v2881 = vrot.slane %v2880, 2
      %v2882 = vadd.f32 %v2880, %v2881
      %v2883 = vrot.slane %v2882, 1
      %v2884 = vadd.f32 %v2882, %v2883
      %v2885 = vsel %vm1233, %v2757, 0.0
      %v2886 = vrot.slane %v2885, 4
      %v2887 = vadd.f32 %v2885, %v2886
      %v2888 = vrot.slane %v2887, 2
      %v2889 = vadd.f32 %v2887, %v2888
      %v2890 = vrot.slane %v2889, 1
      %v2891 = vadd.f32 %v2889, %v2890
      %v2892 = vsel %vm1233, %v2758, 0.0
      %v2893 = vrot.slane %v2892, 4
      %v2894 = vadd.f32 %v2892, %v2893
      %v2895 = vrot.slane %v2894, 2
      %v2896 = vadd.f32 %v2894, %v2895
      %v2897 = vrot.slane %v2896, 1
      %v2898 = vadd.f32 %v2896, %v2897
      %v2899 = vsel %vm1233, %v2759, 0.0
      %v2900 = vrot.slane %v2899, 4
      %v2901 = vadd.f32 %v2899, %v2900
      %v2902 = vrot.slane %v2901, 2
      %v2903 = vadd.f32 %v2901, %v2902
      %v2904 = vrot.slane %v2903, 1
      %v2905 = vadd.f32 %v2903, %v2904
      %v2906 = vsel %vm1233, %v2760, 0.0
      %v2907 = vrot.slane %v2906, 4
      %v2908 = vadd.f32 %v2906, %v2907
      %v2909 = vrot.slane %v2908, 2
      %v2910 = vadd.f32 %v2908, %v2909
      %v2911 = vrot.slane %v2910, 1
      %v2912 = vadd.f32 %v2910, %v2911
      %v2913 = vsel %vm1233, %v2761, 0.0
      %v2914 = vrot.slane %v2913, 4
      %v2915 = vadd.f32 %v2913, %v2914
      %v2916 = vrot.slane %v2915, 2
      %v2917 = vadd.f32 %v2915, %v2916
      %v2918 = vrot.slane %v2917, 1
      %v2919 = vadd.f32 %v2917, %v2918
      %v2920 = vsel %vm1233, %v2762, 0.0
      %v2921 = vrot.slane %v2920, 4
      %v2922 = vadd.f32 %v2920, %v2921
      %v2923 = vrot.slane %v2922, 2
      %v2924 = vadd.f32 %v2922, %v2923
      %v2925 = vrot.slane %v2924, 1
      %v2926 = vadd.f32 %v2924, %v2925
      %v2927 = vsel %vm1233, %v2763, 0.0
      %v2928 = vrot.slane %v2927, 4
      %v2929 = vadd.f32 %v2927, %v2928
      %v2930 = vrot.slane %v2929, 2
      %v2931 = vadd.f32 %v2929, %v2930
      %v2932 = vrot.slane %v2931, 1
      %v2933 = vadd.f32 %v2931, %v2932
      %v2934 = vsel %vm1233, %v2764, 0.0
      %v2935 = vrot.slane %v2934, 4
      %v2936 = vadd.f32 %v2934, %v2935
      %v2937 = vrot.slane %v2936, 2
      %v2938 = vadd.f32 %v2936, %v2937
      %v2939 = vrot.slane %v2938, 1
      %v2940 = vadd.f32 %v2938, %v2939
      %v2941 = vsel %vm1233, %v2765, 0.0
      %v2942 = vrot.slane %v2941, 4
      %v2943 = vadd.f32 %v2941, %v2942
      %v2944 = vrot.slane %v2943, 2
      %v2945 = vadd.f32 %v2943, %v2944
      %v2946 = vrot.slane %v2945, 1
      %v2947 = vadd.f32 %v2945, %v2946
      %v2948 = vsel %vm1233, %v2766, 0.0
      %v2949 = vrot.slane %v2948, 4
      %v2950 = vadd.f32 %v2948, %v2949
      %v2951 = vrot.slane %v2950, 2
      %v2952 = vadd.f32 %v2950, %v2951
      %v2953 = vrot.slane %v2952, 1
      %v2954 = vadd.f32 %v2952, %v2953
      %v2955 = vsel %vm1233, %v2767, 0.0
      %v2956 = vrot.slane %v2955, 4
      %v2957 = vadd.f32 %v2955, %v2956
      %v2958 = vrot.slane %v2957, 2
      %v2959 = vadd.f32 %v2957, %v2958
      %v2960 = vrot.slane %v2959, 1
      %v2961 = vadd.f32 %v2959, %v2960
      %v2962 = vsel %vm1233, %v2768, 0.0
      %v2963 = vrot.slane %v2962, 4
      %v2964 = vadd.f32 %v2962, %v2963
      %v2965 = vrot.slane %v2964, 2
      %v2966 = vadd.f32 %v2964, %v2965
      %v2967 = vrot.slane %v2966, 1
      %v2968 = vadd.f32 %v2966, %v2967
      %v2969 = vsel %vm1233, %v2769, 0.0
      %v2970 = vrot.slane %v2969, 4
      %v2971 = vadd.f32 %v2969, %v2970
      %v2972 = vrot.slane %v2971, 2
      %v2973 = vadd.f32 %v2971, %v2972
      %v2974 = vrot.slane %v2973, 1
      %v2975 = vadd.f32 %v2973, %v2974
      %v2976 = vsel %vm1233, %v2770, 0.0
      %v2977 = vrot.slane %v2976, 4
      %v2978 = vadd.f32 %v2976, %v2977
      %v2979 = vrot.slane %v2978, 2
      %v2980 = vadd.f32 %v2978, %v2979
      %v2981 = vrot.slane %v2980, 1
      %v2982 = vadd.f32 %v2980, %v2981
      %v2983 = vsel %vm1233, %v2771, 0.0
      %v2984 = vrot.slane %v2983, 4
      %v2985 = vadd.f32 %v2983, %v2984
      %v2986 = vrot.slane %v2985, 2
      %v2987 = vadd.f32 %v2985, %v2986
      %v2988 = vrot.slane %v2987, 1
      %v2989 = vadd.f32 %v2987, %v2988
      %v2990 = vsel %vm1233, %v2772, 0.0
      %v2991 = vrot.slane %v2990, 4
      %v2992 = vadd.f32 %v2990, %v2991
      %v2993 = vrot.slane %v2992, 2
      %v2994 = vadd.f32 %v2992, %v2993
      %v2995 = vrot.slane %v2994, 1
      %v2996 = vadd.f32 %v2994, %v2995
      %v3029 = vsel %vm2429, %v2786, %v2779
      %v3030 = vsel %vm2431, %v2793, %v3029
      %v3031 = vsel %vm2433, %v2800, %v3030
      %v3032 = vsel %vm2435, %v2807, %v3031
      %v3033 = vsel %vm2437, %v2814, %v3032
      %v3034 = vsel %vm2439, %v2821, %v3033
      %v3035 = vsel %vm2441, %v2828, %v3034
      %v3036 = vsel %vm2429, %v2842, %v2835
      %v3037 = vsel %vm2431, %v2849, %v3036
      %v3038 = vsel %vm2433, %v2856, %v3037
      %v3039 = vsel %vm2435, %v2863, %v3038
      %v3040 = vsel %vm2437, %v2870, %v3039
      %v3041 = vsel %vm2439, %v2877, %v3040
      %v3042 = vsel %vm2441, %v2884, %v3041
      %v3043 = vsel %vm2429, %v2898, %v2891
      %v3044 = vsel %vm2431, %v2905, %v3043
      %v3045 = vsel %vm2433, %v2912, %v3044
      %v3046 = vsel %vm2435, %v2919, %v3045
      %v3047 = vsel %vm2437, %v2926, %v3046
      %v3048 = vsel %vm2439, %v2933, %v3047
      %v3049 = vsel %vm2441, %v2940, %v3048
      %v3050 = vsel %vm2429, %v2954, %v2947
      %v3051 = vsel %vm2431, %v2961, %v3050
      %v3052 = vsel %vm2433, %v2968, %v3051
      %v3053 = vsel %vm2435, %v2975, %v3052
      %v3054 = vsel %vm2437, %v2982, %v3053
      %v3055 = vsel %vm2439, %v2989, %v3054
      %v3056 = vsel %vm2441, %v2996, %v3055
      %3061 = vst.msk [vmem:[%s435] sm:$0xff] %vm1233, %v3035
      %3062 = vst.msk [vmem:[%s435 + $0x8] sm:$0xff] %vm1233, %v3042
      %3063 = vst.msk [vmem:[%s435 + $0x10] sm:$0xff] %vm1233, %v3049
      %3064 = vst.msk [vmem:[%s435 + $0x18] sm:$0xff] %vm1233, %v3056
      %3065 = vst.msk [vmem:[%s441] sm:$0xff] %vm2472, %v2513
      %3066 = vst.msk [vmem:[%s441 + $0x8] sm:$0xff] %vm2472, %v2514
      %3067 = vst.msk [vmem:[%s441 + $0x10] sm:$0xff] %vm2472, %v2515
      %3068 = vst.msk [vmem:[%s441 + $0x18] sm:$0xff] %vm2472, %v2516
      %s3069 = smul.u32 4, %s22
      %p3070 = scmp.lt.s32.totalorder %s3069, 7
      %s3071 = scalar_select %p3070, %s3069, 7
      %s3072 = smul.addr %s3071, 8
      %s3073 = scalar_lea.vmem %s9, %s3072
      %s3074 = smul.u32 4, %s22
      %p3075 = scmp.lt.s32.totalorder %s3074, 7
      %s3076 = scalar_select %p3075, %s3074, 7
      %s3077 = smul.addr %s3076, 8
      %s3078 = scalar_lea.vmem %s10, %s3077
      // Predicated region
      $region57: #{tpu_custom_call.1} parent=55 // pred_check
        %p3079 = pneg %p249
      $region58: #{tpu_custom_call.1} parent=55 // pred_check_branch
        %3081 = sbr.rel (%p3079) target = $region60
      $region59: #{tpu_custom_call.1} parent=55 // pred_region
        %s3082 = smul.u32 4, %s22
      $region60: #{tpu_custom_call.1} parent=55 // pred_fallthru
        _
      // Predicated region
      $region61: #{tpu_custom_call.1} parent=55 // pred_check
        %p3083 = pneg %p275
      $region62: #{tpu_custom_call.1} parent=55 // pred_check_branch
        %3085 = sbr.rel (%p3083) target = $region64
      $region63: #{tpu_custom_call.1} parent=55 // pred_region
        %s3086 = smul.u32 4, %s22
      $region64: #{tpu_custom_call.1} parent=55 // pred_fallthru
        _
    $region56: #{tpu_custom_call.1} parent=5 // pred_fallthru
      _
    %p3087 = scmp.le.s32.totalorder 2, %s17
    // Predicated region
    $region65: #{tpu_custom_call.1} parent=5 // pred_check
      %p3088 = pneg %p3087
    $region66: #{tpu_custom_call.1} parent=5 // pred_check_branch
      %3090 = sbr.rel (%p3088) target = $region68
    $region67: #{tpu_custom_call.1} parent=5 // pred_region
      %s3091 = ssub.s32 %s17, 2
      // Predicated region
      $region69: #{tpu_custom_call.1} parent=67 // pred_check
        %p3092 = pneg %p255
      $region70: #{tpu_custom_call.1} parent=67 // pred_check_branch
        %3094 = sbr.rel (%p3092) target = $region72
      $region71: #{tpu_custom_call.1} parent=67 // pred_region
        %s3095 = smul.u32 4, %s23
        %p3096 = scmp.lt.s32.totalorder %s3095, 7
        %s3097 = scalar_select %p3096, %s3095, 7
        %s3098 = smul.addr %s3097, 8
        %s3099 = scalar_lea.vmem %s9, %s3098
      $region72: #{tpu_custom_call.1} parent=67 // pred_fallthru
        _
      // Predicated region
      $region73: #{tpu_custom_call.1} parent=67 // pred_check
        %p3100 = pneg %p281
      $region74: #{tpu_custom_call.1} parent=67 // pred_check_branch
        %3102 = sbr.rel (%p3100) target = $region76
      $region75: #{tpu_custom_call.1} parent=67 // pred_region
        %s3103 = smul.u32 4, %s23
        %p3104 = scmp.lt.s32.totalorder %s3103, 7
        %s3105 = scalar_select %p3104, %s3103, 7
        %s3106 = smul.addr %s3105, 8
        %s3107 = scalar_lea.vmem %s10, %s3106
      $region76: #{tpu_custom_call.1} parent=67 // pred_fallthru
        _
    $region68: #{tpu_custom_call.1} parent=5 // pred_fallthru
      _
  $region6: #{tpu_custom_call.1} parent=0 // loop_footer
    %s21 = sadd.s32 1, %s17
  $region7: #{tpu_custom_call.1} parent=0 // loop_footer_branch
    %16 = sbr.rel target = $region3
  $region8: #{tpu_custom_call.1} parent=0 // loop_exit
    _

</llo_original>
